<compile_context>
chip_gen: v7x
topology: tpu7x:2x2x1
jax: 0.10.0
libtpu: 0.0.40
codegen_flags: <defaults>
</compile_context>

<pallas_src>
import numpy as np
import jax
import jax.numpy as jnp
from jax.experimental import pallas as pl
from jax.experimental.pallas import tpu as pltpu

IMAGENET_MEAN = (0.485, 0.456, 0.406)
IMAGENET_STD = (0.229, 0.224, 0.225)
SCALES = (0.5, 1.0, 2.0, 4.0)             # MultiLoss scales; scale_factor = scale / 4
SWD_LEVEL_WEIGHTS = (1.0, 1.0, 2.0)       # relu3_2 / relu4_2 / relu5_2 weights in SWDLoss
SWD_SCALE = 8.0 / 100.0


# ------------------------- interpolation matrices ---------------------------

def _interp_matrix(n_in, n_out):
    """(n_out, n_in) matrix reproducing bilinear + align_corners=True along one axis."""
    m = np.zeros((n_out, n_in), dtype=np.float32)
    if n_out == 1:
        m[0, 0] = 1.0
        return m
    coords = np.arange(n_out, dtype=np.float64) * (n_in - 1) / (n_out - 1)
    i0 = np.clip(np.floor(coords).astype(np.int64), 0, n_in - 1)
    i1 = np.minimum(i0 + 1, n_in - 1)
    t = (coords - i0).astype(np.float32)
    m[np.arange(n_out), i0] += 1.0 - t
    m[np.arange(n_out), i1] += t
    return m


def _block_diag(mat, reps):
    r, c = mat.shape
    out = np.zeros((r * reps, c * reps), dtype=np.float32)
    for i in range(reps):
        out[i * r:(i + 1) * r, i * c:(i + 1) * c] = mat
    return out


def _scale_dims(H, W):
    return tuple((max(int(np.floor(H * s / 4.0)), 1), max(int(np.floor(W * s / 4.0)), 1))
                 for s in SCALES)


# --------- Pallas kernel 1: all-scale fused resize + norm + weighted L1 -----

def _make_fused_resize_norm_l1_kernel(B, C, H, W, dims, row_offsets):
    mean = IMAGENET_MEAN
    inv_std = tuple(1.0 / s for s in IMAGENET_STD)

    def kernel(ah_ref, awt0_ref, awt1_ref, awt2_ref, sr_ref, hr_ref,
               n0_ref, n1_ref, n2_ref, n3_ref, l1_ref):
        # (1,1) L1 output stays resident across the batch grid (accumulator pattern).
        @pl.when(pl.program_id(0) == 0)
        def _init():
            l1_ref[...] = jnp.zeros_like(l1_ref)

        # Lane-pack both images and all channels: (H, 2C*W), slots
        # [sr_c0, sr_c1, sr_c2, hr_c0, hr_c1, hr_c2].
        x = jnp.concatenate(
            [sr_ref[0, c].astype(jnp.float32) for c in range(C)]
            + [hr_ref[0, c].astype(jnp.float32) for c in range(C)], axis=-1)

        # One stacked row-resize matmul covering the three non-identity scales.
        y_all = jnp.dot(ah_ref[...], x, preferred_element_type=jnp.float32)

        n_refs = (n0_ref, n1_ref, n2_ref, n3_ref)
        awt_refs = (awt0_ref, awt1_ref, awt2_ref)
        total = 0.0
        for si in range(4):
            h_s, w_s = dims[si]
            if si < 3:
                r0 = row_offsets[si]
                # Column resize of all 6 lane-packed slots with one block-diagonal matmul.
                z = jnp.dot(y_all[r0:r0 + h_s, :], awt_refs[si][...],
                            preferred_element_type=jnp.float32)      # (h_s, 2C*w_s)
            else:
                # scale = 4: align_corners bilinear at scale_factor=1 is the identity.
                z = x
            zs = z[:, :C * w_s]           # resized sr (lane-packed channels)
            zh = z[:, C * w_s:]           # resized hr
            # Fused L1 on the *raw* resized images (what MultiLoss.l1 sees), pre-weighted.
            total = total + (SCALES[si] / (B * C * h_s * w_s)) * jnp.sum(jnp.abs(zs - zh))
            # ImageNet normalization for the SWD branch (normalize_batch).
            for k in range(2 * C):
                c = k % C
                n_refs[si][0, k] = ((z[:, k * w_s:(k + 1) * w_s] - mean[c])
                                    * inv_std[c]).astype(n_refs[si].dtype)

        l1_ref[...] = l1_ref[...] + jnp.full((1, 1), total, dtype=jnp.float32)

    return kernel


def _fused_resize_norm_l1(sr, hr):
    B, C, H, W = sr.shape
    dims = _scale_dims(H, W)
    assert dims[3] == (H, W)
    hs = [dims[si][0] for si in range(3)]
    row_offsets = (0, hs[0], hs[0] + hs[1])

    # Stacked row-resize matrix and block-diagonal column-resize matrices (host constants).
    ah_all = np.concatenate([_interp_matrix(H, h) for h in hs], axis=0)      # (h0+h1+h2, H)
    awt_blks = [_block_diag(_interp_matrix(W, dims[si][1]).T, 2 * C) for si in range(3)]

    kernel = _make_fused_resize_norm_l1_kernel(B, C, H, W, dims, row_offsets)

    in_specs = [
        pl.BlockSpec(ah_all.shape, lambda b: (0, 0)),
        pl.BlockSpec(awt_blks[0].shape, lambda b: (0, 0)),
        pl.BlockSpec(awt_blks[1].shape, lambda b: (0, 0)),
        pl.BlockSpec(awt_blks[2].shape, lambda b: (0, 0)),
        pl.BlockSpec((1, C, H, W), lambda b: (b, 0, 0, 0)),
        pl.BlockSpec((1, C, H, W), lambda b: (b, 0, 0, 0)),
    ]
    out_specs = [
        pl.BlockSpec((1, 2 * C, dims[0][0], dims[0][1]), lambda b: (b, 0, 0, 0)),
        pl.BlockSpec((1, 2 * C, dims[1][0], dims[1][1]), lambda b: (b, 0, 0, 0)),
        pl.BlockSpec((1, 2 * C, dims[2][0], dims[2][1]), lambda b: (b, 0, 0, 0)),
        pl.BlockSpec((1, 2 * C, dims[3][0], dims[3][1]), lambda b: (b, 0, 0, 0)),
        pl.BlockSpec((1, 1), lambda b: (0, 0)),      # resident L1 accumulator
    ]
    out_shape = (
        jax.ShapeDtypeStruct((B, 2 * C, dims[0][0], dims[0][1]), jnp.float32),
        jax.ShapeDtypeStruct((B, 2 * C, dims[1][0], dims[1][1]), jnp.float32),
        jax.ShapeDtypeStruct((B, 2 * C, dims[2][0], dims[2][1]), jnp.float32),
        jax.ShapeDtypeStruct((B, 2 * C, dims[3][0], dims[3][1]), jnp.float32),
        jax.ShapeDtypeStruct((1, 1), jnp.float32),
    )
    n0, n1, n2, n3, l1 = pl.pallas_call(
        kernel,
        grid=(B,),
        in_specs=in_specs,
        out_specs=out_specs,
        out_shape=out_shape,
        compiler_params=pltpu.CompilerParams(
            # Batch axis must be "arbitrary" because the L1 scalar accumulates across it.
            # (For large B, switch to per-batch SMEM scalars + "parallel" for megacore.)
            dimension_semantics=("arbitrary",),
            vmem_limit_bytes=32 * 1024 * 1024,
        ),
    )(jnp.asarray(ah_all), jnp.asarray(awt_blks[0]), jnp.asarray(awt_blks[1]),
      jnp.asarray(awt_blks[2]), sr, hr)
    return (n0, n1, n2, n3), l1[0, 0], dims


# ----- Pallas kernel 2: single fused weighted sorted-L1 (all scales/levels) -----

def _make_swd_reduce_kernel(B, C, dims):
    def kernel(*refs):
        o_ref = refs[-1]
        total = 0.0
        for si in range(len(SCALES)):
            sx = refs[2 * si][...].astype(jnp.float32)       # (B, 3C, h*w), sorted
            sy = refs[2 * si + 1][...].astype(jnp.float32)
            d = jnp.abs(sx - sy)
            h, w = dims[si]
            base = SCALES[si] * SWD_SCALE / (B * C * h * w)
            for j, wj in enumerate(SWD_LEVEL_WEIGHTS):
                total = total + (base * wj) * jnp.sum(d[:, j * C:(j + 1) * C, :])
        o_ref[...] = jnp.full((1, 1), total, dtype=jnp.float32)

    return kernel


def _swd_reduce(sorted_pairs, dims, B, C):
    flat_inputs = []
    for sx, sy in sorted_pairs:
        flat_inputs += [sx, sy]
    # TODO(synk): for large images this untiled VMEM reduction should be tiled
    # (grid over (scale, batch) with lane-dense blocks) to fit v5e's 16 MiB scoped VMEM.
    out = pl.pallas_call(
        _make_swd_reduce_kernel(B, C, dims),
        out_shape=jax.ShapeDtypeStruct((1, 1), jnp.float32),
        in_specs=[pl.BlockSpec(memory_space=pltpu.MemorySpace.VMEM)] * len(flat_inputs),
        out_specs=pl.BlockSpec(memory_space=pltpu.MemorySpace.VMEM),
        compiler_params=pltpu.CompilerParams(vmem_limit_bytes=32 * 1024 * 1024),
    )(*flat_inputs)
    return out[0, 0]


# --------------------------------- SWD glue ----------------------------------

def _stacked_projections(key, C):
    """Three row-normalized (C,C) projections stacked into one (3C,C) matrix."""
    keys = jax.random.split(key, len(SWD_LEVEL_WEIGHTS))
    proj = jnp.concatenate([jax.random.normal(k, (C, C), dtype=jnp.float32) for k in keys],
                           axis=0)
    norm = jnp.sqrt(jnp.sum(proj * proj, axis=1, keepdims=True))
    return proj / jnp.maximum(norm, 1e-12)           # F.normalize(p=2, dim=1)


# ------------------------------ MultiLoss forward -----------------------------

def multi_loss(sr, hr, proj_key):
    """Returns (loss_EDSR_L1, loss_EDSR_SWD, total), mirroring MultiLoss.forward."""
    B, C, H, W = sr.shape
    assert C == 3, "ImageNet normalization in SWDLoss assumes 3 channels"

    # Kernel 1: all four scales, resize + normalization + weighted L1, one launch.
    nouts, l1_sum, dims = _fused_resize_norm_l1(sr, hr)
    loss_l1 = l1_sum / 7.5

    # XLA glue: one stacked (3C,C) projection einsum + one sort per image per scale.
    sorted_pairs = []
    for si in range(len(SCALES)):
        h, w = dims[si]
        nx = nouts[si][:, :C].reshape(B, C, h * w)
        ny = nouts[si][:, C:].reshape(B, C, h * w)
        proj = _stacked_projections(jax.random.fold_in(proj_key, si), C)     # (3C, C)
        px = jnp.einsum('pc,bcn->bpn', proj, nx)
        py = jnp.einsum('pc,bcn->bpn', proj, ny)
        sorted_pairs.append((jnp.sort(px, axis=-1), jnp.sort(py, axis=-1)))

    # Kernel 2: one fused weighted sorted-L1 reduction over all scales & levels.
    loss_swd = _swd_reduce(sorted_pairs, dims, B, C) / 7.5
    return loss_l1, loss_swd, loss_l1 + loss_swd


# ---------------------------- Pure-JAX reference ------------------------------

def _ref_multi_loss(sr, hr, proj_key):
    B, C, H, W = sr.shape
    mean = jnp.asarray(IMAGENET_MEAN, jnp.float32).reshape(1, C, 1, 1)
    std = jnp.asarray(IMAGENET_STD, jnp.float32).reshape(1, C, 1, 1)
    dims = _scale_dims(H, W)
    loss_l1 = jnp.float32(0.0)
    loss_swd = jnp.float32(0.0)
    for si, scale in enumerate(SCALES):
        h_out, w_out = dims[si]
        ah = jnp.asarray(_interp_matrix(H, h_out))
        aw = jnp.asarray(_interp_matrix(W, w_out))
        dsr = jnp.einsum('pw,bcow->bcop', aw, jnp.einsum('oh,bchw->bcow', ah, sr))
        dhr = jnp.einsum('pw,bcow->bcop', aw, jnp.einsum('oh,bchw->bcow', ah, hr))
        loss_l1 = loss_l1 + jnp.mean(jnp.abs(dsr - dhr)) * scale
        nx = (dsr - mean) / std
        ny = (dhr - mean) / std
        xf = nx.reshape(B, C, -1)
        yf = ny.reshape(B, C, -1)
        proj = _stacked_projections(jax.random.fold_in(proj_key, si), C)
        px = jnp.sort(jnp.einsum('pc,bcn->bpn', proj, xf), axis=-1)
        py = jnp.sort(jnp.einsum('pc,bcn->bpn', proj, yf), axis=-1)
        swd = jnp.float32(0.0)
        for j, wj in enumerate(SWD_LEVEL_WEIGHTS):
            swd = swd + wj * jnp.mean(jnp.abs(px[:, j * C:(j + 1) * C]
                                              - py[:, j * C:(j + 1) * C]))
        loss_swd = loss_swd + swd * SWD_SCALE * scale
    loss_l1 = loss_l1 / 7.5
    loss_swd = loss_swd / 7.5
    return loss_l1, loss_swd, loss_l1 + loss_swd


# ------------------------------------ Main ------------------------------------

if __name__ == "__main__":
    root = jax.random.PRNGKey(0)
    k_sr, k_hr, k_proj = jax.random.split(root, 3)
    B, C, H, W = 2, 3, 16, 16     # 3 channels: normalize_batch uses ImageNet RGB stats
    sr = jax.random.uniform(k_sr, (B, C, H, W), dtype=jnp.float32)
    hr = jax.random.uniform(k_hr, (B, C, H, W), dtype=jnp.float32)

    fn = jax.jit(multi_loss)
    out = jax.block_until_ready(fn(sr, hr, k_proj))
    ref = jax.block_until_ready(_ref_multi_loss(sr, hr, k_proj))

    for got, want in zip(out, ref):
        np.testing.assert_allclose(np.asarray(got), np.asarray(want), rtol=1e-4, atol=1e-4)
    print("KERNEL_OK")
</pallas_src>

<mosaic_0001>
module attributes {stable_mosaic.version = 11 : i64} {
  func.func @kernel(%arg0: i32, %arg1: memref<14x16xf32, #tpu.memory_space<vmem>>, %arg2: memref<96x12xf32, #tpu.memory_space<vmem>>, %arg3: memref<96x24xf32, #tpu.memory_space<vmem>>, %arg4: memref<96x48xf32, #tpu.memory_space<vmem>>, %arg5: memref<1x3x16x16xf32, #tpu.memory_space<vmem>>, %arg6: memref<1x3x16x16xf32, #tpu.memory_space<vmem>>, %arg7: memref<1x6x2x2xf32, #tpu.memory_space<vmem>>, %arg8: memref<1x6x4x4xf32, #tpu.memory_space<vmem>>, %arg9: memref<1x6x8x8xf32, #tpu.memory_space<vmem>>, %arg10: memref<1x6x16x16xf32, #tpu.memory_space<vmem>>, %arg11: memref<1x1xf32, #tpu.memory_space<vmem>>) attributes {dimension_semantics = [#tpu.dimension_semantics<arbitrary>], iteration_bounds = array<i64: 2>, scalar_prefetch = 0 : i64, scratch_operands = 0 : i64, tpu.core_type = #tpu.core_type<tc>, window_params = [{pipeline_mode = #tpu.pipeline_mode<synchronous>, transform_indices = @transform_0, window_bounds = array<i64: 14, 16>}, {pipeline_mode = #tpu.pipeline_mode<synchronous>, transform_indices = @transform_1, window_bounds = array<i64: 96, 12>}, {pipeline_mode = #tpu.pipeline_mode<synchronous>, transform_indices = @transform_2, window_bounds = array<i64: 96, 24>}, {pipeline_mode = #tpu.pipeline_mode<synchronous>, transform_indices = @transform_3, window_bounds = array<i64: 96, 48>}, {transform_indices = @transform_4, window_bounds = array<i64: 1, 3, 16, 16>}, {transform_indices = @transform_5, window_bounds = array<i64: 1, 3, 16, 16>}, {transform_indices = @transform_6, window_bounds = array<i64: 1, 6, 2, 2>}, {transform_indices = @transform_7, window_bounds = array<i64: 1, 6, 4, 4>}, {transform_indices = @transform_8, window_bounds = array<i64: 1, 6, 8, 8>}, {transform_indices = @transform_9, window_bounds = array<i64: 1, 6, 16, 16>}, {pipeline_mode = #tpu.pipeline_mode<synchronous>, transform_indices = @transform_10, window_bounds = array<i64: 1, 1>}]} {
    %c0_i32 = arith.constant 0 : i32
    %0 = arith.cmpi eq, %arg0, %c0_i32 : i32
    %1 = arith.extui %0 : i1 to i32
    %c0_i32_0 = arith.constant 0 : i32
    %2 = arith.cmpi ne, %1, %c0_i32_0 : i32
    scf.if %2 {
      %cst_187 = arith.constant 0.000000e+00 : f32
      %263 = vector.broadcast %cst_187 : f32 to vector<1x1xf32>
      %c0_188 = arith.constant 0 : index
      %c0_189 = arith.constant 0 : index
      %264 = vector.load %arg11[%c0_188, %c0_189] : memref<1x1xf32, #tpu.memory_space<vmem>>, vector<1x1xf32>
      tpu.vector_store %arg11[%c0_188, %c0_189], %263 {strides = array<i32>} : memref<1x1xf32, #tpu.memory_space<vmem>>, vector<1x1xf32>,
    } else {
    }
    %c0 = arith.constant 0 : index
    %c0_1 = arith.constant 0 : index
    %c0_2 = arith.constant 0 : index
    %c0_3 = arith.constant 0 : index
    %3 = vector.load %arg5[%c0, %c0_1, %c0_2, %c0_3] : memref<1x3x16x16xf32, #tpu.memory_space<vmem>>, vector<1x1x16x16xf32>
    %4 = vector.shape_cast %3 : vector<1x1x16x16xf32> to vector<16x16xf32>
    %c0_4 = arith.constant 0 : index
    %c1 = arith.constant 1 : index
    %c0_5 = arith.constant 0 : index
    %c0_6 = arith.constant 0 : index
    %5 = vector.load %arg5[%c0_4, %c1, %c0_5, %c0_6] : memref<1x3x16x16xf32, #tpu.memory_space<vmem>>, vector<1x1x16x16xf32>
    %6 = vector.shape_cast %5 : vector<1x1x16x16xf32> to vector<16x16xf32>
    %c0_7 = arith.constant 0 : index
    %c2 = arith.constant 2 : index
    %c0_8 = arith.constant 0 : index
    %c0_9 = arith.constant 0 : index
    %7 = vector.load %arg5[%c0_7, %c2, %c0_8, %c0_9] : memref<1x3x16x16xf32, #tpu.memory_space<vmem>>, vector<1x1x16x16xf32>
    %8 = vector.shape_cast %7 : vector<1x1x16x16xf32> to vector<16x16xf32>
    %c0_10 = arith.constant 0 : index
    %c0_11 = arith.constant 0 : index
    %c0_12 = arith.constant 0 : index
    %c0_13 = arith.constant 0 : index
    %9 = vector.load %arg6[%c0_10, %c0_11, %c0_12, %c0_13] : memref<1x3x16x16xf32, #tpu.memory_space<vmem>>, vector<1x1x16x16xf32>
    %10 = vector.shape_cast %9 : vector<1x1x16x16xf32> to vector<16x16xf32>
    %c0_14 = arith.constant 0 : index
    %c1_15 = arith.constant 1 : index
    %c0_16 = arith.constant 0 : index
    %c0_17 = arith.constant 0 : index
    %11 = vector.load %arg6[%c0_14, %c1_15, %c0_16, %c0_17] : memref<1x3x16x16xf32, #tpu.memory_space<vmem>>, vector<1x1x16x16xf32>
    %12 = vector.shape_cast %11 : vector<1x1x16x16xf32> to vector<16x16xf32>
    %c0_18 = arith.constant 0 : index
    %c2_19 = arith.constant 2 : index
    %c0_20 = arith.constant 0 : index
    %c0_21 = arith.constant 0 : index
    %13 = vector.load %arg6[%c0_18, %c2_19, %c0_20, %c0_21] : memref<1x3x16x16xf32, #tpu.memory_space<vmem>>, vector<1x1x16x16xf32>
    %14 = vector.shape_cast %13 : vector<1x1x16x16xf32> to vector<16x16xf32>
    %15 = tpu.concatenate %4, %6, %8, %10, %12, %14 in 1 : vector<16x16xf32>, vector<16x16xf32>, vector<16x16xf32>, vector<16x16xf32>, vector<16x16xf32>, vector<16x16xf32> -> vector<16x96xf32>
    %c0_22 = arith.constant 0 : index
    %c0_23 = arith.constant 0 : index
    %16 = vector.load %arg1[%c0_22, %c0_23] : memref<14x16xf32, #tpu.memory_space<vmem>>, vector<14x16xf32>
    %cst = arith.constant dense<0.000000e+00> : vector<14x96xf32>
    %17 = tpu.matmul %16, %15, %cst {dimension_numbers = #tpu.dot_dimension_numbers<[1], [0], [0], [1], [0, 0, 1, 1], [], []>} : vector<14x16xf32>, vector<16x96xf32>, vector<14x96xf32> -> vector<14x96xf32>
    %18 = vector.extract_strided_slice %17 {offsets = [0, 0], sizes = [2, 96], strides = [1, 1]} : vector<14x96xf32> to vector<2x96xf32>
    %c0_24 = arith.constant 0 : index
    %c0_25 = arith.constant 0 : index
    %19 = vector.load %arg2[%c0_24, %c0_25] : memref<96x12xf32, #tpu.memory_space<vmem>>, vector<96x12xf32>
    %cst_26 = arith.constant dense<0.000000e+00> : vector<2x12xf32>
    %20 = tpu.matmul %18, %19, %cst_26 {dimension_numbers = #tpu.dot_dimension_numbers<[1], [0], [0], [1], [0, 0, 1, 1], [], []>} : vector<2x96xf32>, vector<96x12xf32>, vector<2x12xf32> -> vector<2x12xf32>
    %21 = vector.extract_strided_slice %20 {offsets = [0, 0], sizes = [2, 6], strides = [1, 1]} : vector<2x12xf32> to vector<2x6xf32>
    %22 = vector.extract_strided_slice %20 {offsets = [0, 6], sizes = [2, 6], strides = [1, 1]} : vector<2x12xf32> to vector<2x6xf32>
    %23 = arith.subf %21, %22 : vector<2x6xf32>
    %24 = math.absf %23 : vector<2x6xf32>
    %25 = vector.shape_cast %24 : vector<2x6xf32> to vector<1x2x6xf32>
    %cst_27 = arith.constant dense<0.000000e+00> : vector<1xf32>
    %26 = vector.multi_reduction <add>, %25, %cst_27 [1, 2] : vector<1x2x6xf32> to vector<1xf32>
    %27 = vector.shape_cast %26 : vector<1xf32> to vector<1x1x1xf32>
    %28 = vector.extract %27[0, 0, 0] : f32 from vector<1x1x1xf32>
    %cst_28 = arith.constant 0.020833334 : f32
    %29 = arith.mulf %cst_28, %28 : f32
    %cst_29 = arith.constant 0.000000e+00 : f32
    %30 = arith.addf %cst_29, %29 : f32
    %31 = vector.extract_strided_slice %20 {offsets = [0, 0], sizes = [2, 2], strides = [1, 1]} : vector<2x12xf32> to vector<2x2xf32>
    %cst_30 = arith.constant 4.850000e-01 : f32
    %32 = vector.broadcast %cst_30 : f32 to vector<2x2xf32>
    %33 = arith.subf %31, %32 : vector<2x2xf32>
    %cst_31 = arith.constant 4.36681223 : f32
    %34 = vector.broadcast %cst_31 : f32 to vector<2x2xf32>
    %35 = arith.mulf %33, %34 : vector<2x2xf32>
    %c0_32 = arith.constant 0 : index
    %c0_33 = arith.constant 0 : index
    %c0_34 = arith.constant 0 : index
    %c0_35 = arith.constant 0 : index
    %36 = vector.load %arg7[%c0_32, %c0_33, %c0_34, %c0_35] : memref<1x6x2x2xf32, #tpu.memory_space<vmem>>, vector<1x1x2x2xf32>
    %37 = vector.shape_cast %36 : vector<1x1x2x2xf32> to vector<2x2xf32>
    %38 = vector.shape_cast %35 : vector<2x2xf32> to vector<1x1x2x2xf32>
    tpu.vector_store %arg7[%c0_32, %c0_33, %c0_34, %c0_35], %38 {strides = array<i32>} : memref<1x6x2x2xf32, #tpu.memory_space<vmem>>, vector<1x1x2x2xf32>,
    %39 = vector.extract_strided_slice %20 {offsets = [0, 2], sizes = [2, 2], strides = [1, 1]} : vector<2x12xf32> to vector<2x2xf32>
    %cst_36 = arith.constant 4.560000e-01 : f32
    %40 = vector.broadcast %cst_36 : f32 to vector<2x2xf32>
    %41 = arith.subf %39, %40 : vector<2x2xf32>
    %cst_37 = arith.constant 4.46428585 : f32
    %42 = vector.broadcast %cst_37 : f32 to vector<2x2xf32>
    %43 = arith.mulf %41, %42 : vector<2x2xf32>
    %c0_38 = arith.constant 0 : index
    %c1_39 = arith.constant 1 : index
    %c0_40 = arith.constant 0 : index
    %c0_41 = arith.constant 0 : index
    %44 = vector.load %arg7[%c0_38, %c1_39, %c0_40, %c0_41] : memref<1x6x2x2xf32, #tpu.memory_space<vmem>>, vector<1x1x2x2xf32>
    %45 = vector.shape_cast %44 : vector<1x1x2x2xf32> to vector<2x2xf32>
    %46 = vector.shape_cast %43 : vector<2x2xf32> to vector<1x1x2x2xf32>
    tpu.vector_store %arg7[%c0_38, %c1_39, %c0_40, %c0_41], %46 {strides = array<i32>} : memref<1x6x2x2xf32, #tpu.memory_space<vmem>>, vector<1x1x2x2xf32>,
    %47 = vector.extract_strided_slice %20 {offsets = [0, 4], sizes = [2, 2], strides = [1, 1]} : vector<2x12xf32> to vector<2x2xf32>
    %cst_42 = arith.constant 4.060000e-01 : f32
    %48 = vector.broadcast %cst_42 : f32 to vector<2x2xf32>
    %49 = arith.subf %47, %48 : vector<2x2xf32>
    %cst_43 = arith.constant 4.44444466 : f32
    %50 = vector.broadcast %cst_43 : f32 to vector<2x2xf32>
    %51 = arith.mulf %49, %50 : vector<2x2xf32>
    %c0_44 = arith.constant 0 : index
    %c2_45 = arith.constant 2 : index
    %c0_46 = arith.constant 0 : index
    %c0_47 = arith.constant 0 : index
    %52 = vector.load %arg7[%c0_44, %c2_45, %c0_46, %c0_47] : memref<1x6x2x2xf32, #tpu.memory_space<vmem>>, vector<1x1x2x2xf32>
    %53 = vector.shape_cast %52 : vector<1x1x2x2xf32> to vector<2x2xf32>
    %54 = vector.shape_cast %51 : vector<2x2xf32> to vector<1x1x2x2xf32>
    tpu.vector_store %arg7[%c0_44, %c2_45, %c0_46, %c0_47], %54 {strides = array<i32>} : memref<1x6x2x2xf32, #tpu.memory_space<vmem>>, vector<1x1x2x2xf32>,
    %55 = vector.extract_strided_slice %20 {offsets = [0, 6], sizes = [2, 2], strides = [1, 1]} : vector<2x12xf32> to vector<2x2xf32>
    %cst_48 = arith.constant 4.850000e-01 : f32
    %56 = vector.broadcast %cst_48 : f32 to vector<2x2xf32>
    %57 = arith.subf %55, %56 : vector<2x2xf32>
    %cst_49 = arith.constant 4.36681223 : f32
    %58 = vector.broadcast %cst_49 : f32 to vector<2x2xf32>
    %59 = arith.mulf %57, %58 : vector<2x2xf32>
    %c0_50 = arith.constant 0 : index
    %c3 = arith.constant 3 : index
    %c0_51 = arith.constant 0 : index
    %c0_52 = arith.constant 0 : index
    %60 = vector.load %arg7[%c0_50, %c3, %c0_51, %c0_52] : memref<1x6x2x2xf32, #tpu.memory_space<vmem>>, vector<1x1x2x2xf32>
    %61 = vector.shape_cast %60 : vector<1x1x2x2xf32> to vector<2x2xf32>
    %62 = vector.shape_cast %59 : vector<2x2xf32> to vector<1x1x2x2xf32>
    tpu.vector_store %arg7[%c0_50, %c3, %c0_51, %c0_52], %62 {strides = array<i32>} : memref<1x6x2x2xf32, #tpu.memory_space<vmem>>, vector<1x1x2x2xf32>,
    %63 = vector.extract_strided_slice %20 {offsets = [0, 8], sizes = [2, 2], strides = [1, 1]} : vector<2x12xf32> to vector<2x2xf32>
    %cst_53 = arith.constant 4.560000e-01 : f32
    %64 = vector.broadcast %cst_53 : f32 to vector<2x2xf32>
    %65 = arith.subf %63, %64 : vector<2x2xf32>
    %cst_54 = arith.constant 4.46428585 : f32
    %66 = vector.broadcast %cst_54 : f32 to vector<2x2xf32>
    %67 = arith.mulf %65, %66 : vector<2x2xf32>
    %c0_55 = arith.constant 0 : index
    %c4 = arith.constant 4 : index
    %c0_56 = arith.constant 0 : index
    %c0_57 = arith.constant 0 : index
    %68 = vector.load %arg7[%c0_55, %c4, %c0_56, %c0_57] : memref<1x6x2x2xf32, #tpu.memory_space<vmem>>, vector<1x1x2x2xf32>
    %69 = vector.shape_cast %68 : vector<1x1x2x2xf32> to vector<2x2xf32>
    %70 = vector.shape_cast %67 : vector<2x2xf32> to vector<1x1x2x2xf32>
    tpu.vector_store %arg7[%c0_55, %c4, %c0_56, %c0_57], %70 {strides = array<i32>} : memref<1x6x2x2xf32, #tpu.memory_space<vmem>>, vector<1x1x2x2xf32>,
    %71 = vector.extract_strided_slice %20 {offsets = [0, 10], sizes = [2, 2], strides = [1, 1]} : vector<2x12xf32> to vector<2x2xf32>
    %cst_58 = arith.constant 4.060000e-01 : f32
    %72 = vector.broadcast %cst_58 : f32 to vector<2x2xf32>
    %73 = arith.subf %71, %72 : vector<2x2xf32>
    %cst_59 = arith.constant 4.44444466 : f32
    %74 = vector.broadcast %cst_59 : f32 to vector<2x2xf32>
    %75 = arith.mulf %73, %74 : vector<2x2xf32>
    %c0_60 = arith.constant 0 : index
    %c5 = arith.constant 5 : index
    %c0_61 = arith.constant 0 : index
    %c0_62 = arith.constant 0 : index
    %76 = vector.load %arg7[%c0_60, %c5, %c0_61, %c0_62] : memref<1x6x2x2xf32, #tpu.memory_space<vmem>>, vector<1x1x2x2xf32>
    %77 = vector.shape_cast %76 : vector<1x1x2x2xf32> to vector<2x2xf32>
    %78 = vector.shape_cast %75 : vector<2x2xf32> to vector<1x1x2x2xf32>
    tpu.vector_store %arg7[%c0_60, %c5, %c0_61, %c0_62], %78 {strides = array<i32>} : memref<1x6x2x2xf32, #tpu.memory_space<vmem>>, vector<1x1x2x2xf32>,
    %79 = vector.extract_strided_slice %17 {offsets = [2, 0], sizes = [4, 96], strides = [1, 1]} : vector<14x96xf32> to vector<4x96xf32>
    %c0_63 = arith.constant 0 : index
    %c0_64 = arith.constant 0 : index
    %80 = vector.load %arg3[%c0_63, %c0_64] : memref<96x24xf32, #tpu.memory_space<vmem>>, vector<96x24xf32>
    %cst_65 = arith.constant dense<0.000000e+00> : vector<4x24xf32>
    %81 = tpu.matmul %79, %80, %cst_65 {dimension_numbers = #tpu.dot_dimension_numbers<[1], [0], [0], [1], [0, 0, 1, 1], [], []>} : vector<4x96xf32>, vector<96x24xf32>, vector<4x24xf32> -> vector<4x24xf32>
    %82 = vector.extract_strided_slice %81 {offsets = [0, 0], sizes = [4, 12], strides = [1, 1]} : vector<4x24xf32> to vector<4x12xf32>
    %83 = vector.extract_strided_slice %81 {offsets = [0, 12], sizes = [4, 12], strides = [1, 1]} : vector<4x24xf32> to vector<4x12xf32>
    %84 = arith.subf %82, %83 : vector<4x12xf32>
    %85 = math.absf %84 : vector<4x12xf32>
    %86 = vector.shape_cast %85 : vector<4x12xf32> to vector<1x4x12xf32>
    %cst_66 = arith.constant dense<0.000000e+00> : vector<1xf32>
    %87 = vector.multi_reduction <add>, %86, %cst_66 [1, 2] : vector<1x4x12xf32> to vector<1xf32>
    %88 = vector.shape_cast %87 : vector<1xf32> to vector<1x1x1xf32>
    %89 = vector.extract %88[0, 0, 0] : f32 from vector<1x1x1xf32>
    %cst_67 = arith.constant 0.010416667 : f32
    %90 = arith.mulf %cst_67, %89 : f32
    %91 = arith.addf %30, %90 : f32
    %92 = vector.extract_strided_slice %81 {offsets = [0, 0], sizes = [4, 4], strides = [1, 1]} : vector<4x24xf32> to vector<4x4xf32>
    %cst_68 = arith.constant 4.850000e-01 : f32
    %93 = vector.broadcast %cst_68 : f32 to vector<4x4xf32>
    %94 = arith.subf %92, %93 : vector<4x4xf32>
    %cst_69 = arith.constant 4.36681223 : f32
    %95 = vector.broadcast %cst_69 : f32 to vector<4x4xf32>
    %96 = arith.mulf %94, %95 : vector<4x4xf32>
    %c0_70 = arith.constant 0 : index
    %c0_71 = arith.constant 0 : index
    %c0_72 = arith.constant 0 : index
    %c0_73 = arith.constant 0 : index
    %97 = vector.load %arg8[%c0_70, %c0_71, %c0_72, %c0_73] : memref<1x6x4x4xf32, #tpu.memory_space<vmem>>, vector<1x1x4x4xf32>
    %98 = vector.shape_cast %97 : vector<1x1x4x4xf32> to vector<4x4xf32>
    %99 = vector.shape_cast %96 : vector<4x4xf32> to vector<1x1x4x4xf32>
    tpu.vector_store %arg8[%c0_70, %c0_71, %c0_72, %c0_73], %99 {strides = array<i32>} : memref<1x6x4x4xf32, #tpu.memory_space<vmem>>, vector<1x1x4x4xf32>,
    %100 = vector.extract_strided_slice %81 {offsets = [0, 4], sizes = [4, 4], strides = [1, 1]} : vector<4x24xf32> to vector<4x4xf32>
    %cst_74 = arith.constant 4.560000e-01 : f32
    %101 = vector.broadcast %cst_74 : f32 to vector<4x4xf32>
    %102 = arith.subf %100, %101 : vector<4x4xf32>
    %cst_75 = arith.constant 4.46428585 : f32
    %103 = vector.broadcast %cst_75 : f32 to vector<4x4xf32>
    %104 = arith.mulf %102, %103 : vector<4x4xf32>
    %c0_76 = arith.constant 0 : index
    %c1_77 = arith.constant 1 : index
    %c0_78 = arith.constant 0 : index
    %c0_79 = arith.constant 0 : index
    %105 = vector.load %arg8[%c0_76, %c1_77, %c0_78, %c0_79] : memref<1x6x4x4xf32, #tpu.memory_space<vmem>>, vector<1x1x4x4xf32>
    %106 = vector.shape_cast %105 : vector<1x1x4x4xf32> to vector<4x4xf32>
    %107 = vector.shape_cast %104 : vector<4x4xf32> to vector<1x1x4x4xf32>
    tpu.vector_store %arg8[%c0_76, %c1_77, %c0_78, %c0_79], %107 {strides = array<i32>} : memref<1x6x4x4xf32, #tpu.memory_space<vmem>>, vector<1x1x4x4xf32>,
    %108 = vector.extract_strided_slice %81 {offsets = [0, 8], sizes = [4, 4], strides = [1, 1]} : vector<4x24xf32> to vector<4x4xf32>
    %cst_80 = arith.constant 4.060000e-01 : f32
    %109 = vector.broadcast %cst_80 : f32 to vector<4x4xf32>
    %110 = arith.subf %108, %109 : vector<4x4xf32>
    %cst_81 = arith.constant 4.44444466 : f32
    %111 = vector.broadcast %cst_81 : f32 to vector<4x4xf32>
    %112 = arith.mulf %110, %111 : vector<4x4xf32>
    %c0_82 = arith.constant 0 : index
    %c2_83 = arith.constant 2 : index
    %c0_84 = arith.constant 0 : index
    %c0_85 = arith.constant 0 : index
    %113 = vector.load %arg8[%c0_82, %c2_83, %c0_84, %c0_85] : memref<1x6x4x4xf32, #tpu.memory_space<vmem>>, vector<1x1x4x4xf32>
    %114 = vector.shape_cast %113 : vector<1x1x4x4xf32> to vector<4x4xf32>
    %115 = vector.shape_cast %112 : vector<4x4xf32> to vector<1x1x4x4xf32>
    tpu.vector_store %arg8[%c0_82, %c2_83, %c0_84, %c0_85], %115 {strides = array<i32>} : memref<1x6x4x4xf32, #tpu.memory_space<vmem>>, vector<1x1x4x4xf32>,
    %116 = vector.extract_strided_slice %81 {offsets = [0, 12], sizes = [4, 4], strides = [1, 1]} : vector<4x24xf32> to vector<4x4xf32>
    %cst_86 = arith.constant 4.850000e-01 : f32
    %117 = vector.broadcast %cst_86 : f32 to vector<4x4xf32>
    %118 = arith.subf %116, %117 : vector<4x4xf32>
    %cst_87 = arith.constant 4.36681223 : f32
    %119 = vector.broadcast %cst_87 : f32 to vector<4x4xf32>
    %120 = arith.mulf %118, %119 : vector<4x4xf32>
    %c0_88 = arith.constant 0 : index
    %c3_89 = arith.constant 3 : index
    %c0_90 = arith.constant 0 : index
    %c0_91 = arith.constant 0 : index
    %121 = vector.load %arg8[%c0_88, %c3_89, %c0_90, %c0_91] : memref<1x6x4x4xf32, #tpu.memory_space<vmem>>, vector<1x1x4x4xf32>
    %122 = vector.shape_cast %121 : vector<1x1x4x4xf32> to vector<4x4xf32>
    %123 = vector.shape_cast %120 : vector<4x4xf32> to vector<1x1x4x4xf32>
    tpu.vector_store %arg8[%c0_88, %c3_89, %c0_90, %c0_91], %123 {strides = array<i32>} : memref<1x6x4x4xf32, #tpu.memory_space<vmem>>, vector<1x1x4x4xf32>,
    %124 = vector.extract_strided_slice %81 {offsets = [0, 16], sizes = [4, 4], strides = [1, 1]} : vector<4x24xf32> to vector<4x4xf32>
    %cst_92 = arith.constant 4.560000e-01 : f32
    %125 = vector.broadcast %cst_92 : f32 to vector<4x4xf32>
    %126 = arith.subf %124, %125 : vector<4x4xf32>
    %cst_93 = arith.constant 4.46428585 : f32
    %127 = vector.broadcast %cst_93 : f32 to vector<4x4xf32>
    %128 = arith.mulf %126, %127 : vector<4x4xf32>
    %c0_94 = arith.constant 0 : index
    %c4_95 = arith.constant 4 : index
    %c0_96 = arith.constant 0 : index
    %c0_97 = arith.constant 0 : index
    %129 = vector.load %arg8[%c0_94, %c4_95, %c0_96, %c0_97] : memref<1x6x4x4xf32, #tpu.memory_space<vmem>>, vector<1x1x4x4xf32>
    %130 = vector.shape_cast %129 : vector<1x1x4x4xf32> to vector<4x4xf32>
    %131 = vector.shape_cast %128 : vector<4x4xf32> to vector<1x1x4x4xf32>
    tpu.vector_store %arg8[%c0_94, %c4_95, %c0_96, %c0_97], %131 {strides = array<i32>} : memref<1x6x4x4xf32, #tpu.memory_space<vmem>>, vector<1x1x4x4xf32>,
    %132 = vector.extract_strided_slice %81 {offsets = [0, 20], sizes = [4, 4], strides = [1, 1]} : vector<4x24xf32> to vector<4x4xf32>
    %cst_98 = arith.constant 4.060000e-01 : f32
    %133 = vector.broadcast %cst_98 : f32 to vector<4x4xf32>
    %134 = arith.subf %132, %133 : vector<4x4xf32>
    %cst_99 = arith.constant 4.44444466 : f32
    %135 = vector.broadcast %cst_99 : f32 to vector<4x4xf32>
    %136 = arith.mulf %134, %135 : vector<4x4xf32>
    %c0_100 = arith.constant 0 : index
    %c5_101 = arith.constant 5 : index
    %c0_102 = arith.constant 0 : index
    %c0_103 = arith.constant 0 : index
    %137 = vector.load %arg8[%c0_100, %c5_101, %c0_102, %c0_103] : memref<1x6x4x4xf32, #tpu.memory_space<vmem>>, vector<1x1x4x4xf32>
    %138 = vector.shape_cast %137 : vector<1x1x4x4xf32> to vector<4x4xf32>
    %139 = vector.shape_cast %136 : vector<4x4xf32> to vector<1x1x4x4xf32>
    tpu.vector_store %arg8[%c0_100, %c5_101, %c0_102, %c0_103], %139 {strides = array<i32>} : memref<1x6x4x4xf32, #tpu.memory_space<vmem>>, vector<1x1x4x4xf32>,
    %140 = vector.extract_strided_slice %17 {offsets = [6, 0], sizes = [8, 96], strides = [1, 1]} : vector<14x96xf32> to vector<8x96xf32>
    %c0_104 = arith.constant 0 : index
    %c0_105 = arith.constant 0 : index
    %141 = vector.load %arg4[%c0_104, %c0_105] : memref<96x48xf32, #tpu.memory_space<vmem>>, vector<96x48xf32>
    %cst_106 = arith.constant dense<0.000000e+00> : vector<8x48xf32>
    %142 = tpu.matmul %140, %141, %cst_106 {dimension_numbers = #tpu.dot_dimension_numbers<[1], [0], [0], [1], [0, 0, 1, 1], [], []>} : vector<8x96xf32>, vector<96x48xf32>, vector<8x48xf32> -> vector<8x48xf32>
    %143 = vector.extract_strided_slice %142 {offsets = [0, 0], sizes = [8, 24], strides = [1, 1]} : vector<8x48xf32> to vector<8x24xf32>
    %144 = vector.extract_strided_slice %142 {offsets = [0, 24], sizes = [8, 24], strides = [1, 1]} : vector<8x48xf32> to vector<8x24xf32>
    %145 = arith.subf %143, %144 : vector<8x24xf32>
    %146 = math.absf %145 : vector<8x24xf32>
    %147 = vector.shape_cast %146 : vector<8x24xf32> to vector<1x8x24xf32>
    %cst_107 = arith.constant dense<0.000000e+00> : vector<1xf32>
    %148 = vector.multi_reduction <add>, %147, %cst_107 [1, 2] : vector<1x8x24xf32> to vector<1xf32>
    %149 = vector.shape_cast %148 : vector<1xf32> to vector<1x1x1xf32>
    %150 = vector.extract %149[0, 0, 0] : f32 from vector<1x1x1xf32>
    %cst_108 = arith.constant 0.00520833349 : f32
    %151 = arith.mulf %cst_108, %150 : f32
    %152 = arith.addf %91, %151 : f32
    %153 = vector.extract_strided_slice %142 {offsets = [0, 0], sizes = [8, 8], strides = [1, 1]} : vector<8x48xf32> to vector<8x8xf32>
    %cst_109 = arith.constant 4.850000e-01 : f32
    %154 = vector.broadcast %cst_109 : f32 to vector<8x8xf32>
    %155 = arith.subf %153, %154 : vector<8x8xf32>
    %cst_110 = arith.constant 4.36681223 : f32
    %156 = vector.broadcast %cst_110 : f32 to vector<8x8xf32>
    %157 = arith.mulf %155, %156 : vector<8x8xf32>
    %c0_111 = arith.constant 0 : index
    %c0_112 = arith.constant 0 : index
    %c0_113 = arith.constant 0 : index
    %c0_114 = arith.constant 0 : index
    %158 = vector.load %arg9[%c0_111, %c0_112, %c0_113, %c0_114] : memref<1x6x8x8xf32, #tpu.memory_space<vmem>>, vector<1x1x8x8xf32>
    %159 = vector.shape_cast %158 : vector<1x1x8x8xf32> to vector<8x8xf32>
    %160 = vector.shape_cast %157 : vector<8x8xf32> to vector<1x1x8x8xf32>
    tpu.vector_store %arg9[%c0_111, %c0_112, %c0_113, %c0_114], %160 {strides = array<i32>} : memref<1x6x8x8xf32, #tpu.memory_space<vmem>>, vector<1x1x8x8xf32>,
    %161 = vector.extract_strided_slice %142 {offsets = [0, 8], sizes = [8, 8], strides = [1, 1]} : vector<8x48xf32> to vector<8x8xf32>
    %cst_115 = arith.constant 4.560000e-01 : f32
    %162 = vector.broadcast %cst_115 : f32 to vector<8x8xf32>
    %163 = arith.subf %161, %162 : vector<8x8xf32>
    %cst_116 = arith.constant 4.46428585 : f32
    %164 = vector.broadcast %cst_116 : f32 to vector<8x8xf32>
    %165 = arith.mulf %163, %164 : vector<8x8xf32>
    %c0_117 = arith.constant 0 : index
    %c1_118 = arith.constant 1 : index
    %c0_119 = arith.constant 0 : index
    %c0_120 = arith.constant 0 : index
    %166 = vector.load %arg9[%c0_117, %c1_118, %c0_119, %c0_120] : memref<1x6x8x8xf32, #tpu.memory_space<vmem>>, vector<1x1x8x8xf32>
    %167 = vector.shape_cast %166 : vector<1x1x8x8xf32> to vector<8x8xf32>
    %168 = vector.shape_cast %165 : vector<8x8xf32> to vector<1x1x8x8xf32>
    tpu.vector_store %arg9[%c0_117, %c1_118, %c0_119, %c0_120], %168 {strides = array<i32>} : memref<1x6x8x8xf32, #tpu.memory_space<vmem>>, vector<1x1x8x8xf32>,
    %169 = vector.extract_strided_slice %142 {offsets = [0, 16], sizes = [8, 8], strides = [1, 1]} : vector<8x48xf32> to vector<8x8xf32>
    %cst_121 = arith.constant 4.060000e-01 : f32
    %170 = vector.broadcast %cst_121 : f32 to vector<8x8xf32>
    %171 = arith.subf %169, %170 : vector<8x8xf32>
    %cst_122 = arith.constant 4.44444466 : f32
    %172 = vector.broadcast %cst_122 : f32 to vector<8x8xf32>
    %173 = arith.mulf %171, %172 : vector<8x8xf32>
    %c0_123 = arith.constant 0 : index
    %c2_124 = arith.constant 2 : index
    %c0_125 = arith.constant 0 : index
    %c0_126 = arith.constant 0 : index
    %174 = vector.load %arg9[%c0_123, %c2_124, %c0_125, %c0_126] : memref<1x6x8x8xf32, #tpu.memory_space<vmem>>, vector<1x1x8x8xf32>
    %175 = vector.shape_cast %174 : vector<1x1x8x8xf32> to vector<8x8xf32>
    %176 = vector.shape_cast %173 : vector<8x8xf32> to vector<1x1x8x8xf32>
    tpu.vector_store %arg9[%c0_123, %c2_124, %c0_125, %c0_126], %176 {strides = array<i32>} : memref<1x6x8x8xf32, #tpu.memory_space<vmem>>, vector<1x1x8x8xf32>,
    %177 = vector.extract_strided_slice %142 {offsets = [0, 24], sizes = [8, 8], strides = [1, 1]} : vector<8x48xf32> to vector<8x8xf32>
    %cst_127 = arith.constant 4.850000e-01 : f32
    %178 = vector.broadcast %cst_127 : f32 to vector<8x8xf32>
    %179 = arith.subf %177, %178 : vector<8x8xf32>
    %cst_128 = arith.constant 4.36681223 : f32
    %180 = vector.broadcast %cst_128 : f32 to vector<8x8xf32>
    %181 = arith.mulf %179, %180 : vector<8x8xf32>
    %c0_129 = arith.constant 0 : index
    %c3_130 = arith.constant 3 : index
    %c0_131 = arith.constant 0 : index
    %c0_132 = arith.constant 0 : index
    %182 = vector.load %arg9[%c0_129, %c3_130, %c0_131, %c0_132] : memref<1x6x8x8xf32, #tpu.memory_space<vmem>>, vector<1x1x8x8xf32>
    %183 = vector.shape_cast %182 : vector<1x1x8x8xf32> to vector<8x8xf32>
    %184 = vector.shape_cast %181 : vector<8x8xf32> to vector<1x1x8x8xf32>
    tpu.vector_store %arg9[%c0_129, %c3_130, %c0_131, %c0_132], %184 {strides = array<i32>} : memref<1x6x8x8xf32, #tpu.memory_space<vmem>>, vector<1x1x8x8xf32>,
    %185 = vector.extract_strided_slice %142 {offsets = [0, 32], sizes = [8, 8], strides = [1, 1]} : vector<8x48xf32> to vector<8x8xf32>
    %cst_133 = arith.constant 4.560000e-01 : f32
    %186 = vector.broadcast %cst_133 : f32 to vector<8x8xf32>
    %187 = arith.subf %185, %186 : vector<8x8xf32>
    %cst_134 = arith.constant 4.46428585 : f32
    %188 = vector.broadcast %cst_134 : f32 to vector<8x8xf32>
    %189 = arith.mulf %187, %188 : vector<8x8xf32>
    %c0_135 = arith.constant 0 : index
    %c4_136 = arith.constant 4 : index
    %c0_137 = arith.constant 0 : index
    %c0_138 = arith.constant 0 : index
    %190 = vector.load %arg9[%c0_135, %c4_136, %c0_137, %c0_138] : memref<1x6x8x8xf32, #tpu.memory_space<vmem>>, vector<1x1x8x8xf32>
    %191 = vector.shape_cast %190 : vector<1x1x8x8xf32> to vector<8x8xf32>
    %192 = vector.shape_cast %189 : vector<8x8xf32> to vector<1x1x8x8xf32>
    tpu.vector_store %arg9[%c0_135, %c4_136, %c0_137, %c0_138], %192 {strides = array<i32>} : memref<1x6x8x8xf32, #tpu.memory_space<vmem>>, vector<1x1x8x8xf32>,
    %193 = vector.extract_strided_slice %142 {offsets = [0, 40], sizes = [8, 8], strides = [1, 1]} : vector<8x48xf32> to vector<8x8xf32>
    %cst_139 = arith.constant 4.060000e-01 : f32
    %194 = vector.broadcast %cst_139 : f32 to vector<8x8xf32>
    %195 = arith.subf %193, %194 : vector<8x8xf32>
    %cst_140 = arith.constant 4.44444466 : f32
    %196 = vector.broadcast %cst_140 : f32 to vector<8x8xf32>
    %197 = arith.mulf %195, %196 : vector<8x8xf32>
    %c0_141 = arith.constant 0 : index
    %c5_142 = arith.constant 5 : index
    %c0_143 = arith.constant 0 : index
    %c0_144 = arith.constant 0 : index
    %198 = vector.load %arg9[%c0_141, %c5_142, %c0_143, %c0_144] : memref<1x6x8x8xf32, #tpu.memory_space<vmem>>, vector<1x1x8x8xf32>
    %199 = vector.shape_cast %198 : vector<1x1x8x8xf32> to vector<8x8xf32>
    %200 = vector.shape_cast %197 : vector<8x8xf32> to vector<1x1x8x8xf32>
    tpu.vector_store %arg9[%c0_141, %c5_142, %c0_143, %c0_144], %200 {strides = array<i32>} : memref<1x6x8x8xf32, #tpu.memory_space<vmem>>, vector<1x1x8x8xf32>,
    %201 = vector.extract_strided_slice %15 {offsets = [0, 0], sizes = [16, 48], strides = [1, 1]} : vector<16x96xf32> to vector<16x48xf32>
    %202 = vector.extract_strided_slice %15 {offsets = [0, 48], sizes = [16, 48], strides = [1, 1]} : vector<16x96xf32> to vector<16x48xf32>
    %203 = arith.subf %201, %202 : vector<16x48xf32>
    %204 = math.absf %203 : vector<16x48xf32>
    %205 = vector.shape_cast %204 : vector<16x48xf32> to vector<1x16x48xf32>
    %cst_145 = arith.constant dense<0.000000e+00> : vector<1xf32>
    %206 = vector.multi_reduction <add>, %205, %cst_145 [1, 2] : vector<1x16x48xf32> to vector<1xf32>
    %207 = vector.shape_cast %206 : vector<1xf32> to vector<1x1x1xf32>
    %208 = vector.extract %207[0, 0, 0] : f32 from vector<1x1x1xf32>
    %cst_146 = arith.constant 0.00260416674 : f32
    %209 = arith.mulf %cst_146, %208 : f32
    %210 = arith.addf %152, %209 : f32
    %211 = vector.extract_strided_slice %15 {offsets = [0, 0], sizes = [16, 16], strides = [1, 1]} : vector<16x96xf32> to vector<16x16xf32>
    %cst_147 = arith.constant 4.850000e-01 : f32
    %212 = vector.broadcast %cst_147 : f32 to vector<16x16xf32>
    %213 = arith.subf %211, %212 : vector<16x16xf32>
    %cst_148 = arith.constant 4.36681223 : f32
    %214 = vector.broadcast %cst_148 : f32 to vector<16x16xf32>
    %215 = arith.mulf %213, %214 : vector<16x16xf32>
    %c0_149 = arith.constant 0 : index
    %c0_150 = arith.constant 0 : index
    %c0_151 = arith.constant 0 : index
    %c0_152 = arith.constant 0 : index
    %216 = vector.load %arg10[%c0_149, %c0_150, %c0_151, %c0_152] : memref<1x6x16x16xf32, #tpu.memory_space<vmem>>, vector<1x1x16x16xf32>
    %217 = vector.shape_cast %216 : vector<1x1x16x16xf32> to vector<16x16xf32>
    %218 = vector.shape_cast %215 : vector<16x16xf32> to vector<1x1x16x16xf32>
    tpu.vector_store %arg10[%c0_149, %c0_150, %c0_151, %c0_152], %218 {strides = array<i32>} : memref<1x6x16x16xf32, #tpu.memory_space<vmem>>, vector<1x1x16x16xf32>,
    %219 = vector.extract_strided_slice %15 {offsets = [0, 16], sizes = [16, 16], strides = [1, 1]} : vector<16x96xf32> to vector<16x16xf32>
    %cst_153 = arith.constant 4.560000e-01 : f32
    %220 = vector.broadcast %cst_153 : f32 to vector<16x16xf32>
    %221 = arith.subf %219, %220 : vector<16x16xf32>
    %cst_154 = arith.constant 4.46428585 : f32
    %222 = vector.broadcast %cst_154 : f32 to vector<16x16xf32>
    %223 = arith.mulf %221, %222 : vector<16x16xf32>
    %c0_155 = arith.constant 0 : index
    %c1_156 = arith.constant 1 : index
    %c0_157 = arith.constant 0 : index
    %c0_158 = arith.constant 0 : index
    %224 = vector.load %arg10[%c0_155, %c1_156, %c0_157, %c0_158] : memref<1x6x16x16xf32, #tpu.memory_space<vmem>>, vector<1x1x16x16xf32>
    %225 = vector.shape_cast %224 : vector<1x1x16x16xf32> to vector<16x16xf32>
    %226 = vector.shape_cast %223 : vector<16x16xf32> to vector<1x1x16x16xf32>
    tpu.vector_store %arg10[%c0_155, %c1_156, %c0_157, %c0_158], %226 {strides = array<i32>} : memref<1x6x16x16xf32, #tpu.memory_space<vmem>>, vector<1x1x16x16xf32>,
    %227 = vector.extract_strided_slice %15 {offsets = [0, 32], sizes = [16, 16], strides = [1, 1]} : vector<16x96xf32> to vector<16x16xf32>
    %cst_159 = arith.constant 4.060000e-01 : f32
    %228 = vector.broadcast %cst_159 : f32 to vector<16x16xf32>
    %229 = arith.subf %227, %228 : vector<16x16xf32>
    %cst_160 = arith.constant 4.44444466 : f32
    %230 = vector.broadcast %cst_160 : f32 to vector<16x16xf32>
    %231 = arith.mulf %229, %230 : vector<16x16xf32>
    %c0_161 = arith.constant 0 : index
    %c2_162 = arith.constant 2 : index
    %c0_163 = arith.constant 0 : index
    %c0_164 = arith.constant 0 : index
    %232 = vector.load %arg10[%c0_161, %c2_162, %c0_163, %c0_164] : memref<1x6x16x16xf32, #tpu.memory_space<vmem>>, vector<1x1x16x16xf32>
    %233 = vector.shape_cast %232 : vector<1x1x16x16xf32> to vector<16x16xf32>
    %234 = vector.shape_cast %231 : vector<16x16xf32> to vector<1x1x16x16xf32>
    tpu.vector_store %arg10[%c0_161, %c2_162, %c0_163, %c0_164], %234 {strides = array<i32>} : memref<1x6x16x16xf32, #tpu.memory_space<vmem>>, vector<1x1x16x16xf32>,
    %235 = vector.extract_strided_slice %15 {offsets = [0, 48], sizes = [16, 16], strides = [1, 1]} : vector<16x96xf32> to vector<16x16xf32>
    %cst_165 = arith.constant 4.850000e-01 : f32
    %236 = vector.broadcast %cst_165 : f32 to vector<16x16xf32>
    %237 = arith.subf %235, %236 : vector<16x16xf32>
    %cst_166 = arith.constant 4.36681223 : f32
    %238 = vector.broadcast %cst_166 : f32 to vector<16x16xf32>
    %239 = arith.mulf %237, %238 : vector<16x16xf32>
    %c0_167 = arith.constant 0 : index
    %c3_168 = arith.constant 3 : index
    %c0_169 = arith.constant 0 : index
    %c0_170 = arith.constant 0 : index
    %240 = vector.load %arg10[%c0_167, %c3_168, %c0_169, %c0_170] : memref<1x6x16x16xf32, #tpu.memory_space<vmem>>, vector<1x1x16x16xf32>
    %241 = vector.shape_cast %240 : vector<1x1x16x16xf32> to vector<16x16xf32>
    %242 = vector.shape_cast %239 : vector<16x16xf32> to vector<1x1x16x16xf32>
    tpu.vector_store %arg10[%c0_167, %c3_168, %c0_169, %c0_170], %242 {strides = array<i32>} : memref<1x6x16x16xf32, #tpu.memory_space<vmem>>, vector<1x1x16x16xf32>,
    %243 = vector.extract_strided_slice %15 {offsets = [0, 64], sizes = [16, 16], strides = [1, 1]} : vector<16x96xf32> to vector<16x16xf32>
    %cst_171 = arith.constant 4.560000e-01 : f32
    %244 = vector.broadcast %cst_171 : f32 to vector<16x16xf32>
    %245 = arith.subf %243, %244 : vector<16x16xf32>
    %cst_172 = arith.constant 4.46428585 : f32
    %246 = vector.broadcast %cst_172 : f32 to vector<16x16xf32>
    %247 = arith.mulf %245, %246 : vector<16x16xf32>
    %c0_173 = arith.constant 0 : index
    %c4_174 = arith.constant 4 : index
    %c0_175 = arith.constant 0 : index
    %c0_176 = arith.constant 0 : index
    %248 = vector.load %arg10[%c0_173, %c4_174, %c0_175, %c0_176] : memref<1x6x16x16xf32, #tpu.memory_space<vmem>>, vector<1x1x16x16xf32>
    %249 = vector.shape_cast %248 : vector<1x1x16x16xf32> to vector<16x16xf32>
    %250 = vector.shape_cast %247 : vector<16x16xf32> to vector<1x1x16x16xf32>
    tpu.vector_store %arg10[%c0_173, %c4_174, %c0_175, %c0_176], %250 {strides = array<i32>} : memref<1x6x16x16xf32, #tpu.memory_space<vmem>>, vector<1x1x16x16xf32>,
    %251 = vector.extract_strided_slice %15 {offsets = [0, 80], sizes = [16, 16], strides = [1, 1]} : vector<16x96xf32> to vector<16x16xf32>
    %cst_177 = arith.constant 4.060000e-01 : f32
    %252 = vector.broadcast %cst_177 : f32 to vector<16x16xf32>
    %253 = arith.subf %251, %252 : vector<16x16xf32>
    %cst_178 = arith.constant 4.44444466 : f32
    %254 = vector.broadcast %cst_178 : f32 to vector<16x16xf32>
    %255 = arith.mulf %253, %254 : vector<16x16xf32>
    %c0_179 = arith.constant 0 : index
    %c5_180 = arith.constant 5 : index
    %c0_181 = arith.constant 0 : index
    %c0_182 = arith.constant 0 : index
    %256 = vector.load %arg10[%c0_179, %c5_180, %c0_181, %c0_182] : memref<1x6x16x16xf32, #tpu.memory_space<vmem>>, vector<1x1x16x16xf32>
    %257 = vector.shape_cast %256 : vector<1x1x16x16xf32> to vector<16x16xf32>
    %258 = vector.shape_cast %255 : vector<16x16xf32> to vector<1x1x16x16xf32>
    tpu.vector_store %arg10[%c0_179, %c5_180, %c0_181, %c0_182], %258 {strides = array<i32>} : memref<1x6x16x16xf32, #tpu.memory_space<vmem>>, vector<1x1x16x16xf32>,
    %c0_183 = arith.constant 0 : index
    %c0_184 = arith.constant 0 : index
    %259 = vector.load %arg11[%c0_183, %c0_184] : memref<1x1xf32, #tpu.memory_space<vmem>>, vector<1x1xf32>
    %260 = vector.broadcast %210 : f32 to vector<1x1xf32>
    %261 = arith.addf %259, %260 : vector<1x1xf32>
    %c0_185 = arith.constant 0 : index
    %c0_186 = arith.constant 0 : index
    %262 = vector.load %arg11[%c0_185, %c0_186] : memref<1x1xf32, #tpu.memory_space<vmem>>, vector<1x1xf32>
    tpu.vector_store %arg11[%c0_185, %c0_186], %261 {strides = array<i32>} : memref<1x1xf32, #tpu.memory_space<vmem>>, vector<1x1xf32>,
    return
  }
  func.func @transform_0(%arg0: i32) -> (i32, i32) {
    %c0_i32 = arith.constant 0 : i32
    %c0_i32_0 = arith.constant 0 : i32
    %c0_i32_1 = arith.constant 0 : i32
    return %c0_i32, %c0_i32_0 : i32, i32
  }
  func.func @transform_1(%arg0: i32) -> (i32, i32) {
    %c0_i32 = arith.constant 0 : i32
    %c0_i32_0 = arith.constant 0 : i32
    %c0_i32_1 = arith.constant 0 : i32
    return %c0_i32, %c0_i32_0 : i32, i32
  }
  func.func @transform_2(%arg0: i32) -> (i32, i32) {
    %c0_i32 = arith.constant 0 : i32
    %c0_i32_0 = arith.constant 0 : i32
    %c0_i32_1 = arith.constant 0 : i32
    return %c0_i32, %c0_i32_0 : i32, i32
  }
  func.func @transform_3(%arg0: i32) -> (i32, i32) {
    %c0_i32 = arith.constant 0 : i32
    %c0_i32_0 = arith.constant 0 : i32
    %c0_i32_1 = arith.constant 0 : i32
    return %c0_i32, %c0_i32_0 : i32, i32
  }
  func.func @transform_4(%arg0: i32) -> (i32, i32, i32, i32) {
    %c0_i32 = arith.constant 0 : i32
    %c0_i32_0 = arith.constant 0 : i32
    %c0_i32_1 = arith.constant 0 : i32
    %c0_i32_2 = arith.constant 0 : i32
    return %arg0, %c0_i32, %c0_i32_0, %c0_i32_1 : i32, i32, i32, i32
  }
  func.func @transform_5(%arg0: i32) -> (i32, i32, i32, i32) {
    %c0_i32 = arith.constant 0 : i32
    %c0_i32_0 = arith.constant 0 : i32
    %c0_i32_1 = arith.constant 0 : i32
    %c0_i32_2 = arith.constant 0 : i32
    return %arg0, %c0_i32, %c0_i32_0, %c0_i32_1 : i32, i32, i32, i32
  }
  func.func @transform_6(%arg0: i32) -> (i32, i32, i32, i32) {
    %c0_i32 = arith.constant 0 : i32
    %c0_i32_0 = arith.constant 0 : i32
    %c0_i32_1 = arith.constant 0 : i32
    %c0_i32_2 = arith.constant 0 : i32
    return %arg0, %c0_i32, %c0_i32_0, %c0_i32_1 : i32, i32, i32, i32
  }
  func.func @transform_7(%arg0: i32) -> (i32, i32, i32, i32) {
    %c0_i32 = arith.constant 0 : i32
    %c0_i32_0 = arith.constant 0 : i32
    %c0_i32_1 = arith.constant 0 : i32
    %c0_i32_2 = arith.constant 0 : i32
    return %arg0, %c0_i32, %c0_i32_0, %c0_i32_1 : i32, i32, i32, i32
  }
  func.func @transform_8(%arg0: i32) -> (i32, i32, i32, i32) {
    %c0_i32 = arith.constant 0 : i32
    %c0_i32_0 = arith.constant 0 : i32
    %c0_i32_1 = arith.constant 0 : i32
    %c0_i32_2 = arith.constant 0 : i32
    return %arg0, %c0_i32, %c0_i32_0, %c0_i32_1 : i32, i32, i32, i32
  }
  func.func @transform_9(%arg0: i32) -> (i32, i32, i32, i32) {
    %c0_i32 = arith.constant 0 : i32
    %c0_i32_0 = arith.constant 0 : i32
    %c0_i32_1 = arith.constant 0 : i32
    %c0_i32_2 = arith.constant 0 : i32
    return %arg0, %c0_i32, %c0_i32_0, %c0_i32_1 : i32, i32, i32, i32
  }
  func.func @transform_10(%arg0: i32) -> (i32, i32) {
    %c0_i32 = arith.constant 0 : i32
    %c0_i32_0 = arith.constant 0 : i32
    %c0_i32_1 = arith.constant 0 : i32
    return %c0_i32, %c0_i32_0 : i32, i32
  }
}

module attributes {stable_mosaic.version = 11 : i64} {
  func.func @kernel(%arg0: memref<2x9x4xf32, #tpu.memory_space<vmem>>, %arg1: memref<2x9x4xf32, #tpu.memory_space<vmem>>, %arg2: memref<2x9x16xf32, #tpu.memory_space<vmem>>, %arg3: memref<2x9x16xf32, #tpu.memory_space<vmem>>, %arg4: memref<2x9x64xf32, #tpu.memory_space<vmem>>, %arg5: memref<2x9x64xf32, #tpu.memory_space<vmem>>, %arg6: memref<2x9x256xf32, #tpu.memory_space<vmem>>, %arg7: memref<2x9x256xf32, #tpu.memory_space<vmem>>, %arg8: memref<1x1xf32, #tpu.memory_space<vmem>>) attributes {dimension_semantics = [], scalar_prefetch = 0 : i64, scratch_operands = 0 : i64, tpu.core_type = #tpu.core_type<tc>} {
    %c0 = arith.constant 0 : index
    %c0_0 = arith.constant 0 : index
    %c0_1 = arith.constant 0 : index
    %0 = vector.load %arg0[%c0, %c0_0, %c0_1] : memref<2x9x4xf32, #tpu.memory_space<vmem>>, vector<2x9x4xf32>
    %c0_2 = arith.constant 0 : index
    %c0_3 = arith.constant 0 : index
    %c0_4 = arith.constant 0 : index
    %1 = vector.load %arg1[%c0_2, %c0_3, %c0_4] : memref<2x9x4xf32, #tpu.memory_space<vmem>>, vector<2x9x4xf32>
    %2 = arith.subf %0, %1 : vector<2x9x4xf32>
    %3 = math.absf %2 : vector<2x9x4xf32>
    %4 = vector.extract_strided_slice %3 {offsets = [0, 0, 0], sizes = [2, 3, 4], strides = [1, 1, 1]} : vector<2x9x4xf32> to vector<2x3x4xf32>
    %5 = vector.shape_cast %4 : vector<2x3x4xf32> to vector<1x2x3x4xf32>
    %cst = arith.constant dense<0.000000e+00> : vector<1xf32>
    %6 = vector.multi_reduction <add>, %5, %cst [1, 2, 3] : vector<1x2x3x4xf32> to vector<1xf32>
    %7 = vector.shape_cast %6 : vector<1xf32> to vector<1x1x1x1xf32>
    %8 = vector.extract %7[0, 0, 0, 0] : f32 from vector<1x1x1x1xf32>
    %cst_5 = arith.constant 0.00166666671 : f32
    %9 = arith.mulf %cst_5, %8 : f32
    %cst_6 = arith.constant 0.000000e+00 : f32
    %10 = arith.addf %cst_6, %9 : f32
    %11 = vector.extract_strided_slice %3 {offsets = [0, 3, 0], sizes = [2, 3, 4], strides = [1, 1, 1]} : vector<2x9x4xf32> to vector<2x3x4xf32>
    %12 = vector.shape_cast %11 : vector<2x3x4xf32> to vector<1x2x3x4xf32>
    %cst_7 = arith.constant dense<0.000000e+00> : vector<1xf32>
    %13 = vector.multi_reduction <add>, %12, %cst_7 [1, 2, 3] : vector<1x2x3x4xf32> to vector<1xf32>
    %14 = vector.shape_cast %13 : vector<1xf32> to vector<1x1x1x1xf32>
    %15 = vector.extract %14[0, 0, 0, 0] : f32 from vector<1x1x1x1xf32>
    %cst_8 = arith.constant 0.00166666671 : f32
    %16 = arith.mulf %cst_8, %15 : f32
    %17 = arith.addf %10, %16 : f32
    %18 = vector.extract_strided_slice %3 {offsets = [0, 6, 0], sizes = [2, 3, 4], strides = [1, 1, 1]} : vector<2x9x4xf32> to vector<2x3x4xf32>
    %19 = vector.shape_cast %18 : vector<2x3x4xf32> to vector<1x2x3x4xf32>
    %cst_9 = arith.constant dense<0.000000e+00> : vector<1xf32>
    %20 = vector.multi_reduction <add>, %19, %cst_9 [1, 2, 3] : vector<1x2x3x4xf32> to vector<1xf32>
    %21 = vector.shape_cast %20 : vector<1xf32> to vector<1x1x1x1xf32>
    %22 = vector.extract %21[0, 0, 0, 0] : f32 from vector<1x1x1x1xf32>
    %cst_10 = arith.constant 0.00333333341 : f32
    %23 = arith.mulf %cst_10, %22 : f32
    %24 = arith.addf %17, %23 : f32
    %c0_11 = arith.constant 0 : index
    %c0_12 = arith.constant 0 : index
    %c0_13 = arith.constant 0 : index
    %25 = vector.load %arg2[%c0_11, %c0_12, %c0_13] : memref<2x9x16xf32, #tpu.memory_space<vmem>>, vector<2x9x16xf32>
    %c0_14 = arith.constant 0 : index
    %c0_15 = arith.constant 0 : index
    %c0_16 = arith.constant 0 : index
    %26 = vector.load %arg3[%c0_14, %c0_15, %c0_16] : memref<2x9x16xf32, #tpu.memory_space<vmem>>, vector<2x9x16xf32>
    %27 = arith.subf %25, %26 : vector<2x9x16xf32>
    %28 = math.absf %27 : vector<2x9x16xf32>
    %29 = vector.extract_strided_slice %28 {offsets = [0, 0, 0], sizes = [2, 3, 16], strides = [1, 1, 1]} : vector<2x9x16xf32> to vector<2x3x16xf32>
    %30 = vector.shape_cast %29 : vector<2x3x16xf32> to vector<1x2x3x16xf32>
    %cst_17 = arith.constant dense<0.000000e+00> : vector<1xf32>
    %31 = vector.multi_reduction <add>, %30, %cst_17 [1, 2, 3] : vector<1x2x3x16xf32> to vector<1xf32>
    %32 = vector.shape_cast %31 : vector<1xf32> to vector<1x1x1x1xf32>
    %33 = vector.extract %32[0, 0, 0, 0] : f32 from vector<1x1x1x1xf32>
    %cst_18 = arith.constant 8.33333353E-4 : f32
    %34 = arith.mulf %cst_18, %33 : f32
    %35 = arith.addf %24, %34 : f32
    %36 = vector.extract_strided_slice %28 {offsets = [0, 3, 0], sizes = [2, 3, 16], strides = [1, 1, 1]} : vector<2x9x16xf32> to vector<2x3x16xf32>
    %37 = vector.shape_cast %36 : vector<2x3x16xf32> to vector<1x2x3x16xf32>
    %cst_19 = arith.constant dense<0.000000e+00> : vector<1xf32>
    %38 = vector.multi_reduction <add>, %37, %cst_19 [1, 2, 3] : vector<1x2x3x16xf32> to vector<1xf32>
    %39 = vector.shape_cast %38 : vector<1xf32> to vector<1x1x1x1xf32>
    %40 = vector.extract %39[0, 0, 0, 0] : f32 from vector<1x1x1x1xf32>
    %cst_20 = arith.constant 8.33333353E-4 : f32
    %41 = arith.mulf %cst_20, %40 : f32
    %42 = arith.addf %35, %41 : f32
    %43 = vector.extract_strided_slice %28 {offsets = [0, 6, 0], sizes = [2, 3, 16], strides = [1, 1, 1]} : vector<2x9x16xf32> to vector<2x3x16xf32>
    %44 = vector.shape_cast %43 : vector<2x3x16xf32> to vector<1x2x3x16xf32>
    %cst_21 = arith.constant dense<0.000000e+00> : vector<1xf32>
    %45 = vector.multi_reduction <add>, %44, %cst_21 [1, 2, 3] : vector<1x2x3x16xf32> to vector<1xf32>
    %46 = vector.shape_cast %45 : vector<1xf32> to vector<1x1x1x1xf32>
    %47 = vector.extract %46[0, 0, 0, 0] : f32 from vector<1x1x1x1xf32>
    %cst_22 = arith.constant 0.00166666671 : f32
    %48 = arith.mulf %cst_22, %47 : f32
    %49 = arith.addf %42, %48 : f32
    %c0_23 = arith.constant 0 : index
    %c0_24 = arith.constant 0 : index
    %c0_25 = arith.constant 0 : index
    %50 = vector.load %arg4[%c0_23, %c0_24, %c0_25] : memref<2x9x64xf32, #tpu.memory_space<vmem>>, vector<2x9x64xf32>
    %c0_26 = arith.constant 0 : index
    %c0_27 = arith.constant 0 : index
    %c0_28 = arith.constant 0 : index
    %51 = vector.load %arg5[%c0_26, %c0_27, %c0_28] : memref<2x9x64xf32, #tpu.memory_space<vmem>>, vector<2x9x64xf32>
    %52 = arith.subf %50, %51 : vector<2x9x64xf32>
    %53 = math.absf %52 : vector<2x9x64xf32>
    %54 = vector.extract_strided_slice %53 {offsets = [0, 0, 0], sizes = [2, 3, 64], strides = [1, 1, 1]} : vector<2x9x64xf32> to vector<2x3x64xf32>
    %55 = vector.shape_cast %54 : vector<2x3x64xf32> to vector<1x2x3x64xf32>
    %cst_29 = arith.constant dense<0.000000e+00> : vector<1xf32>
    %56 = vector.multi_reduction <add>, %55, %cst_29 [1, 2, 3] : vector<1x2x3x64xf32> to vector<1xf32>
    %57 = vector.shape_cast %56 : vector<1xf32> to vector<1x1x1x1xf32>
    %58 = vector.extract %57[0, 0, 0, 0] : f32 from vector<1x1x1x1xf32>
    %cst_30 = arith.constant 4.16666677E-4 : f32
    %59 = arith.mulf %cst_30, %58 : f32
    %60 = arith.addf %49, %59 : f32
    %61 = vector.extract_strided_slice %53 {offsets = [0, 3, 0], sizes = [2, 3, 64], strides = [1, 1, 1]} : vector<2x9x64xf32> to vector<2x3x64xf32>
    %62 = vector.shape_cast %61 : vector<2x3x64xf32> to vector<1x2x3x64xf32>
    %cst_31 = arith.constant dense<0.000000e+00> : vector<1xf32>
    %63 = vector.multi_reduction <add>, %62, %cst_31 [1, 2, 3] : vector<1x2x3x64xf32> to vector<1xf32>
    %64 = vector.shape_cast %63 : vector<1xf32> to vector<1x1x1x1xf32>
    %65 = vector.extract %64[0, 0, 0, 0] : f32 from vector<1x1x1x1xf32>
    %cst_32 = arith.constant 4.16666677E-4 : f32
    %66 = arith.mulf %cst_32, %65 : f32
    %67 = arith.addf %60, %66 : f32
    %68 = vector.extract_strided_slice %53 {offsets = [0, 6, 0], sizes = [2, 3, 64], strides = [1, 1, 1]} : vector<2x9x64xf32> to vector<2x3x64xf32>
    %69 = vector.shape_cast %68 : vector<2x3x64xf32> to vector<1x2x3x64xf32>
    %cst_33 = arith.constant dense<0.000000e+00> : vector<1xf32>
    %70 = vector.multi_reduction <add>, %69, %cst_33 [1, 2, 3] : vector<1x2x3x64xf32> to vector<1xf32>
    %71 = vector.shape_cast %70 : vector<1xf32> to vector<1x1x1x1xf32>
    %72 = vector.extract %71[0, 0, 0, 0] : f32 from vector<1x1x1x1xf32>
    %cst_34 = arith.constant 8.33333353E-4 : f32
    %73 = arith.mulf %cst_34, %72 : f32
    %74 = arith.addf %67, %73 : f32
    %c0_35 = arith.constant 0 : index
    %c0_36 = arith.constant 0 : index
    %c0_37 = arith.constant 0 : index
    %75 = vector.load %arg6[%c0_35, %c0_36, %c0_37] : memref<2x9x256xf32, #tpu.memory_space<vmem>>, vector<2x9x256xf32>
    %c0_38 = arith.constant 0 : index
    %c0_39 = arith.constant 0 : index
    %c0_40 = arith.constant 0 : index
    %76 = vector.load %arg7[%c0_38, %c0_39, %c0_40] : memref<2x9x256xf32, #tpu.memory_space<vmem>>, vector<2x9x256xf32>
    %77 = arith.subf %75, %76 : vector<2x9x256xf32>
    %78 = math.absf %77 : vector<2x9x256xf32>
    %79 = vector.extract_strided_slice %78 {offsets = [0, 0, 0], sizes = [2, 3, 256], strides = [1, 1, 1]} : vector<2x9x256xf32> to vector<2x3x256xf32>
    %80 = vector.shape_cast %79 : vector<2x3x256xf32> to vector<1x2x3x256xf32>
    %cst_41 = arith.constant dense<0.000000e+00> : vector<1xf32>
    %81 = vector.multi_reduction <add>, %80, %cst_41 [1, 2, 3] : vector<1x2x3x256xf32> to vector<1xf32>
    %82 = vector.shape_cast %81 : vector<1xf32> to vector<1x1x1x1xf32>
    %83 = vector.extract %82[0, 0, 0, 0] : f32 from vector<1x1x1x1xf32>
    %cst_42 = arith.constant 2.08333338E-4 : f32
    %84 = arith.mulf %cst_42, %83 : f32
    %85 = arith.addf %74, %84 : f32
    %86 = vector.extract_strided_slice %78 {offsets = [0, 3, 0], sizes = [2, 3, 256], strides = [1, 1, 1]} : vector<2x9x256xf32> to vector<2x3x256xf32>
    %87 = vector.shape_cast %86 : vector<2x3x256xf32> to vector<1x2x3x256xf32>
    %cst_43 = arith.constant dense<0.000000e+00> : vector<1xf32>
    %88 = vector.multi_reduction <add>, %87, %cst_43 [1, 2, 3] : vector<1x2x3x256xf32> to vector<1xf32>
    %89 = vector.shape_cast %88 : vector<1xf32> to vector<1x1x1x1xf32>
    %90 = vector.extract %89[0, 0, 0, 0] : f32 from vector<1x1x1x1xf32>
    %cst_44 = arith.constant 2.08333338E-4 : f32
    %91 = arith.mulf %cst_44, %90 : f32
    %92 = arith.addf %85, %91 : f32
    %93 = vector.extract_strided_slice %78 {offsets = [0, 6, 0], sizes = [2, 3, 256], strides = [1, 1, 1]} : vector<2x9x256xf32> to vector<2x3x256xf32>
    %94 = vector.shape_cast %93 : vector<2x3x256xf32> to vector<1x2x3x256xf32>
    %cst_45 = arith.constant dense<0.000000e+00> : vector<1xf32>
    %95 = vector.multi_reduction <add>, %94, %cst_45 [1, 2, 3] : vector<1x2x3x256xf32> to vector<1xf32>
    %96 = vector.shape_cast %95 : vector<1xf32> to vector<1x1x1x1xf32>
    %97 = vector.extract %96[0, 0, 0, 0] : f32 from vector<1x1x1x1xf32>
    %cst_46 = arith.constant 4.16666677E-4 : f32
    %98 = arith.mulf %cst_46, %97 : f32
    %99 = arith.addf %92, %98 : f32
    %100 = vector.broadcast %99 : f32 to vector<1x1xf32>
    %c0_47 = arith.constant 0 : index
    %c0_48 = arith.constant 0 : index
    %101 = vector.load %arg8[%c0_47, %c0_48] : memref<1x1xf32, #tpu.memory_space<vmem>>, vector<1x1xf32>
    tpu.vector_store %arg8[%c0_47, %c0_48], %100 {strides = array<i32>} : memref<1x1xf32, #tpu.memory_space<vmem>>, vector<1x1xf32>,
    return
  }
}

</mosaic_0001>

<llo_original>
// kernel: multi_loss.2
$region0: #{multi_loss.2}
  #allocation0 [shape = 'u32[]', space=smem, size = 0x4, offset = 0x4, fixed_abs, tag = 'smem constant byte address 0x4 - core index']
  #allocation1 [shape = 'u32[144,128]{1,0:T(1,128)}', space=vmem, size = 0x12000, scoped, tag = 'internal scratch']
  %s0 = inlined_call_operand.vmem [shape: f32[14,16], index: 0, kind: input, shape index: {}]
  %s1 = inlined_call_operand.vmem [shape: f32[96,12], index: 1, kind: input, shape index: {}]
  %s2 = inlined_call_operand.vmem [shape: f32[96,24], index: 2, kind: input, shape index: {}]
  %s3 = inlined_call_operand.vmem [shape: f32[96,48], index: 3, kind: input, shape index: {}]
  %s4 = inlined_call_operand.vmem [shape: f32[2,3,16,16], index: 4, kind: input, shape index: {}]
  %s5 = inlined_call_operand.vmem [shape: f32[2,3,16,16], index: 5, kind: input, shape index: {}]
  %s6 = inlined_call_operand.vmem [shape: f32[2,6,2,2], index: 6, kind: output, shape index: {0}]
  %s7 = inlined_call_operand.vmem [shape: f32[2,6,4,4], index: 7, kind: output, shape index: {1}]
  %s8 = inlined_call_operand.vmem [shape: f32[2,6,8,8], index: 8, kind: output, shape index: {2}]
  %s9 = inlined_call_operand.vmem [shape: f32[2,6,16,16], index: 9, kind: output, shape index: {3}]
  %s10 = inlined_call_operand.hbm [shape: f32[1,1], index: 10, kind: output, shape index: {4}]
  %11 = xla_tuple %s6, %s7, %s8, %s9, %s10
  %s12 = sld [smem:[#allocation0]]
  $region93: #{multi_loss.2} parent=0
    _
  %s14 = ssub.s32 1, %s12
  %s15 = scalar_select 0, %s14, %s12
  $region1: #{multi_loss.2} parent=0
    #allocation2 [shape = 'u8[512]{0}', space=vmem, size = 0x400, scoped, tag = 'output window, operand 4, single buffered']
    #allocation3 [shape = 's32[2]{0}', space=sflag, size = 0x8, scoped, tag = 'scoped memory for multi_loss.2']
    %16 = vsyncpa [#allocation3], 0
    loop: start=0, step=1, limit=4
    $region2: #{multi_loss.2} parent=1 // loop_pre_header
      _
    $region3: #{multi_loss.2} parent=1 // loop_header
      %s18 = sphi 0, %s22
      %p19 = scmp.ge.s32.totalorder %s18, 4
      %s26 = sphi 0, %s26
      %s28 = sphi 0, %s26
      %s29 = sphi 0, %s28
      %s43 = sphi 0, %s29
      %s47 = sphi 0, %s47
      %s49 = sphi 0, %s47
      %s50 = sphi 0, %s49
      %s64 = sphi 0, %s50
      %s68 = sphi 0, %s68
      %s70 = sphi 0, %s68
      %s71 = sphi 0, %s70
      %s85 = sphi 0, %s71
      %s89 = sphi 0, %s89
      %s91 = sphi 0, %s89
      %s92 = sphi 0, %s91
      %s106 = sphi 0, %s92
      %s112 = sphi 0, %s114
      %s115 = sphi 0, %s112
      %s116 = sphi 0, %s115
      %s132 = sphi 0, %s116
      %s138 = sphi 0, %s140
      %s141 = sphi 0, %s138
      %s142 = sphi 0, %s141
      %s158 = sphi 0, %s142
      %s164 = sphi 0, %s166
      %s167 = sphi 0, %s164
      %s168 = sphi 0, %s167
      %s184 = sphi 0, %s168
      %s190 = sphi 0, %s192
      %s193 = sphi 0, %s190
      %s194 = sphi 0, %s193
      %s210 = sphi 0, %s194
      %s216 = sphi 0, %s218
      %s219 = sphi 0, %s216
      %s220 = sphi 0, %s219
      %s236 = sphi 0, %s220
      %s242 = sphi 0, %s244
      %s245 = sphi 0, %s242
      %s246 = sphi 0, %s245
      %s262 = sphi 0, %s246
      %s266 = sphi 0, %s266
      %s268 = sphi 0, %s266
      %s269 = sphi 0, %s268
      %s283 = sphi 0, %s269
    $region4: #{multi_loss.2} parent=1 // loop_header_branch
      %21 = sbr.rel (%p19) target = $region8
    $region5: #{multi_loss.2} parent=1 // loop_body
      %s23 = ssub.s32 %s18, 1
      %s24 = ssub.s32 %s18, 2
      %s25 = sadd.s32 %s18, 1
      %s27 = sadd.s32 %s26, 1
      %p30 = scmp.eq.s32.totalorder %s18, 1
      %p31 = scmp.ne.s32.totalorder %s26, %s28
      %p32 = scmp.eq.s32.totalorder %s18, 0
      %p33 = por %p31, %p32
      %p34 = scmp.ne.s32.totalorder %s26, %s28
      %p35 = scmp.eq.s32.totalorder %s23, 1
      %p36 = por %p34, %p35
      %p37 = scmp.ne.s32.totalorder %s28, %s29
      %p38 = scmp.eq.s32.totalorder %s23, 0
      %p39 = por %p37, %p38
      %p40 = scmp.ne.s32.totalorder %s28, %s29
      %p41 = scmp.eq.s32.totalorder %s24, 1
      %p42 = por %p40, %p41
      %p44 = scmp.ne.s32.totalorder %s29, %s43
      %p45 = scmp.eq.s32.totalorder %s24, 0
      %p46 = por %p44, %p45
      %s48 = sadd.s32 %s47, 1
      %p51 = scmp.eq.s32.totalorder %s18, 1
      %p52 = scmp.ne.s32.totalorder %s47, %s49
      %p53 = scmp.eq.s32.totalorder %s18, 0
      %p54 = por %p52, %p53
      %p55 = scmp.ne.s32.totalorder %s47, %s49
      %p56 = scmp.eq.s32.totalorder %s23, 1
      %p57 = por %p55, %p56
      %p58 = scmp.ne.s32.totalorder %s49, %s50
      %p59 = scmp.eq.s32.totalorder %s23, 0
      %p60 = por %p58, %p59
      %p61 = scmp.ne.s32.totalorder %s49, %s50
      %p62 = scmp.eq.s32.totalorder %s24, 1
      %p63 = por %p61, %p62
      %p65 = scmp.ne.s32.totalorder %s50, %s64
      %p66 = scmp.eq.s32.totalorder %s24, 0
      %p67 = por %p65, %p66
      %s69 = sadd.s32 %s68, 1
      %p72 = scmp.eq.s32.totalorder %s18, 1
      %p73 = scmp.ne.s32.totalorder %s68, %s70
      %p74 = scmp.eq.s32.totalorder %s18, 0
      %p75 = por %p73, %p74
      %p76 = scmp.ne.s32.totalorder %s68, %s70
      %p77 = scmp.eq.s32.totalorder %s23, 1
      %p78 = por %p76, %p77
      %p79 = scmp.ne.s32.totalorder %s70, %s71
      %p80 = scmp.eq.s32.totalorder %s23, 0
      %p81 = por %p79, %p80
      %p82 = scmp.ne.s32.totalorder %s70, %s71
      %p83 = scmp.eq.s32.totalorder %s24, 1
      %p84 = por %p82, %p83
      %p86 = scmp.ne.s32.totalorder %s71, %s85
      %p87 = scmp.eq.s32.totalorder %s24, 0
      %p88 = por %p86, %p87
      %s90 = sadd.s32 %s89, 1
      %p93 = scmp.eq.s32.totalorder %s18, 1
      %p94 = scmp.ne.s32.totalorder %s89, %s91
      %p95 = scmp.eq.s32.totalorder %s18, 0
      %p96 = por %p94, %p95
      %p97 = scmp.ne.s32.totalorder %s89, %s91
      %p98 = scmp.eq.s32.totalorder %s23, 1
      %p99 = por %p97, %p98
      %p100 = scmp.ne.s32.totalorder %s91, %s92
      %p101 = scmp.eq.s32.totalorder %s23, 0
      %p102 = por %p100, %p101
      %p103 = scmp.ne.s32.totalorder %s91, %s92
      %p104 = scmp.eq.s32.totalorder %s24, 1
      %p105 = por %p103, %p104
      %p107 = scmp.ne.s32.totalorder %s92, %s106
      %p108 = scmp.eq.s32.totalorder %s24, 0
      %p109 = por %p107, %p108
      %s110 = ssub.s32 %s18, %s25
      %p111 = scmp.eq.s32.totalorder %s110, 0
      %s113 = sadd.s32 %s112, 1
      %s114 = scalar_select %p111, %s112, %s113
      %p117 = pneg %p111
      %p118 = scmp.eq.s32.totalorder %s18, 1
      %p119 = por %p117, %p118
      %p120 = scmp.ne.s32.totalorder %s112, %s115
      %p121 = scmp.eq.s32.totalorder %s18, 0
      %p122 = por %p120, %p121
      %p123 = scmp.ne.s32.totalorder %s112, %s115
      %p124 = scmp.eq.s32.totalorder %s23, 1
      %p125 = por %p123, %p124
      %p126 = scmp.ne.s32.totalorder %s115, %s116
      %p127 = scmp.eq.s32.totalorder %s23, 0
      %p128 = por %p126, %p127
      %p129 = scmp.ne.s32.totalorder %s115, %s116
      %p130 = scmp.eq.s32.totalorder %s24, 1
      %p131 = por %p129, %p130
      %p133 = scmp.ne.s32.totalorder %s116, %s132
      %p134 = scmp.eq.s32.totalorder %s24, 0
      %p135 = por %p133, %p134
      %s136 = ssub.s32 %s18, %s25
      %p137 = scmp.eq.s32.totalorder %s136, 0
      %s139 = sadd.s32 %s138, 1
      %s140 = scalar_select %p137, %s138, %s139
      %p143 = pneg %p137
      %p144 = scmp.eq.s32.totalorder %s18, 1
      %p145 = por %p143, %p144
      %p146 = scmp.ne.s32.totalorder %s138, %s141
      %p147 = scmp.eq.s32.totalorder %s18, 0
      %p148 = por %p146, %p147
      %p149 = scmp.ne.s32.totalorder %s138, %s141
      %p150 = scmp.eq.s32.totalorder %s23, 1
      %p151 = por %p149, %p150
      %p152 = scmp.ne.s32.totalorder %s141, %s142
      %p153 = scmp.eq.s32.totalorder %s23, 0
      %p154 = por %p152, %p153
      %p155 = scmp.ne.s32.totalorder %s141, %s142
      %p156 = scmp.eq.s32.totalorder %s24, 1
      %p157 = por %p155, %p156
      %p159 = scmp.ne.s32.totalorder %s142, %s158
      %p160 = scmp.eq.s32.totalorder %s24, 0
      %p161 = por %p159, %p160
      %s162 = ssub.s32 %s18, %s25
      %p163 = scmp.eq.s32.totalorder %s162, 0
      %s165 = sadd.s32 %s164, 1
      %s166 = scalar_select %p163, %s164, %s165
      %p169 = pneg %p163
      %p170 = scmp.eq.s32.totalorder %s18, 1
      %p171 = por %p169, %p170
      %p172 = scmp.ne.s32.totalorder %s164, %s167
      %p173 = scmp.eq.s32.totalorder %s18, 0
      %p174 = por %p172, %p173
      %p175 = scmp.ne.s32.totalorder %s164, %s167
      %p176 = scmp.eq.s32.totalorder %s23, 1
      %p177 = por %p175, %p176
      %p178 = scmp.ne.s32.totalorder %s167, %s168
      %p179 = scmp.eq.s32.totalorder %s23, 0
      %p180 = por %p178, %p179
      %p181 = scmp.ne.s32.totalorder %s167, %s168
      %p182 = scmp.eq.s32.totalorder %s24, 1
      %p183 = por %p181, %p182
      %p185 = scmp.ne.s32.totalorder %s168, %s184
      %p186 = scmp.eq.s32.totalorder %s24, 0
      %p187 = por %p185, %p186
      %s188 = ssub.s32 %s18, %s25
      %p189 = scmp.eq.s32.totalorder %s188, 0
      %s191 = sadd.s32 %s190, 1
      %s192 = scalar_select %p189, %s190, %s191
      %p195 = pneg %p189
      %p196 = scmp.eq.s32.totalorder %s18, 1
      %p197 = por %p195, %p196
      %p198 = scmp.ne.s32.totalorder %s190, %s193
      %p199 = scmp.eq.s32.totalorder %s18, 0
      %p200 = por %p198, %p199
      %p201 = scmp.ne.s32.totalorder %s190, %s193
      %p202 = scmp.eq.s32.totalorder %s23, 1
      %p203 = por %p201, %p202
      %p204 = scmp.ne.s32.totalorder %s193, %s194
      %p205 = scmp.eq.s32.totalorder %s23, 0
      %p206 = por %p204, %p205
      %p207 = scmp.ne.s32.totalorder %s193, %s194
      %p208 = scmp.eq.s32.totalorder %s24, 1
      %p209 = por %p207, %p208
      %p211 = scmp.ne.s32.totalorder %s194, %s210
      %p212 = scmp.eq.s32.totalorder %s24, 0
      %p213 = por %p211, %p212
      %s214 = ssub.s32 %s18, %s25
      %p215 = scmp.eq.s32.totalorder %s214, 0
      %s217 = sadd.s32 %s216, 1
      %s218 = scalar_select %p215, %s216, %s217
      %p221 = pneg %p215
      %p222 = scmp.eq.s32.totalorder %s18, 1
      %p223 = por %p221, %p222
      %p224 = scmp.ne.s32.totalorder %s216, %s219
      %p225 = scmp.eq.s32.totalorder %s18, 0
      %p226 = por %p224, %p225
      %p227 = scmp.ne.s32.totalorder %s216, %s219
      %p228 = scmp.eq.s32.totalorder %s23, 1
      %p229 = por %p227, %p228
      %p230 = scmp.ne.s32.totalorder %s219, %s220
      %p231 = scmp.eq.s32.totalorder %s23, 0
      %p232 = por %p230, %p231
      %p233 = scmp.ne.s32.totalorder %s219, %s220
      %p234 = scmp.eq.s32.totalorder %s24, 1
      %p235 = por %p233, %p234
      %p237 = scmp.ne.s32.totalorder %s220, %s236
      %p238 = scmp.eq.s32.totalorder %s24, 0
      %p239 = por %p237, %p238
      %s240 = ssub.s32 %s18, %s25
      %p241 = scmp.eq.s32.totalorder %s240, 0
      %s243 = sadd.s32 %s242, 1
      %s244 = scalar_select %p241, %s242, %s243
      %p247 = pneg %p241
      %p248 = scmp.eq.s32.totalorder %s18, 1
      %p249 = por %p247, %p248
      %p250 = scmp.ne.s32.totalorder %s242, %s245
      %p251 = scmp.eq.s32.totalorder %s18, 0
      %p252 = por %p250, %p251
      %p253 = scmp.ne.s32.totalorder %s242, %s245
      %p254 = scmp.eq.s32.totalorder %s23, 1
      %p255 = por %p253, %p254
      %p256 = scmp.ne.s32.totalorder %s245, %s246
      %p257 = scmp.eq.s32.totalorder %s23, 0
      %p258 = por %p256, %p257
      %p259 = scmp.ne.s32.totalorder %s245, %s246
      %p260 = scmp.eq.s32.totalorder %s24, 1
      %p261 = por %p259, %p260
      %p263 = scmp.ne.s32.totalorder %s246, %s262
      %p264 = scmp.eq.s32.totalorder %s24, 0
      %p265 = por %p263, %p264
      %s267 = sadd.s32 %s266, 1
      %p270 = scmp.eq.s32.totalorder %s18, 1
      %p271 = scmp.ne.s32.totalorder %s266, %s268
      %p272 = scmp.eq.s32.totalorder %s18, 0
      %p273 = por %p271, %p272
      %p274 = scmp.ne.s32.totalorder %s266, %s268
      %p275 = scmp.eq.s32.totalorder %s23, 1
      %p276 = por %p274, %p275
      %p277 = scmp.ne.s32.totalorder %s268, %s269
      %p278 = scmp.eq.s32.totalorder %s23, 0
      %p279 = por %p277, %p278
      %p280 = scmp.ne.s32.totalorder %s268, %s269
      %p281 = scmp.eq.s32.totalorder %s24, 1
      %p282 = por %p280, %p281
      %p284 = scmp.ne.s32.totalorder %s269, %s283
      %p285 = scmp.eq.s32.totalorder %s24, 0
      %p286 = por %p284, %p285
      %p287 = scmp.le.s32.totalorder 1, %s18
      %p288 = scmp.lt.s32.totalorder %s18, 3
      %p289 = pnand %p287, %p288
      %p290 = pneg %p289
      // Predicated region
      $region9: #{multi_loss.2} parent=5 // pred_check
        _
      $region10: #{multi_loss.2} parent=5 // pred_check_branch
        %292 = sbr.rel (%p289) target = $region12
      $region11: #{multi_loss.2} parent=5 // pred_region
        %s293 = ssub.s32 %s18, 1
        // Predicated region
        $region13: #{multi_loss.2} parent=11 // pred_check
          %p294 = pneg %p39
        $region14: #{multi_loss.2} parent=11 // pred_check_branch
          %296 = sbr.rel (%p294) target = $region16
        $region15: #{multi_loss.2} parent=11 // pred_region
          _
        $region16: #{multi_loss.2} parent=11 // pred_fallthru
          _
        // Predicated region
        $region17: #{multi_loss.2} parent=11 // pred_check
          %p297 = pneg %p60
        $region18: #{multi_loss.2} parent=11 // pred_check_branch
          %299 = sbr.rel (%p297) target = $region20
        $region19: #{multi_loss.2} parent=11 // pred_region
          _
        $region20: #{multi_loss.2} parent=11 // pred_fallthru
          _
        // Predicated region
        $region21: #{multi_loss.2} parent=11 // pred_check
          %p300 = pneg %p81
        $region22: #{multi_loss.2} parent=11 // pred_check_branch
          %302 = sbr.rel (%p300) target = $region24
        $region23: #{multi_loss.2} parent=11 // pred_region
          _
        $region24: #{multi_loss.2} parent=11 // pred_fallthru
          _
        // Predicated region
        $region25: #{multi_loss.2} parent=11 // pred_check
          %p303 = pneg %p102
        $region26: #{multi_loss.2} parent=11 // pred_check_branch
          %305 = sbr.rel (%p303) target = $region28
        $region27: #{multi_loss.2} parent=11 // pred_region
          _
        $region28: #{multi_loss.2} parent=11 // pred_fallthru
          _
      $region12: #{multi_loss.2} parent=5 // pred_fallthru
        _
      %p306 = scmp.lt.s32.totalorder %s18, 2
      // Predicated region
      $region29: #{multi_loss.2} parent=5 // pred_check
        %p307 = pneg %p306
      $region30: #{multi_loss.2} parent=5 // pred_check_branch
        %309 = sbr.rel (%p307) target = $region32
      $region31: #{multi_loss.2} parent=5 // pred_region
        // Predicated region
        $region33: #{multi_loss.2} parent=31 // pred_check
          %p310 = pneg %p122
        $region34: #{multi_loss.2} parent=31 // pred_check_branch
          %312 = sbr.rel (%p310) target = $region36
        $region35: #{multi_loss.2} parent=31 // pred_region
          %p313 = scmp.lt.s32.totalorder %s18, 1
          %s314 = scalar_select %p313, %s18, 1
          %s315 = smul.addr %s314, 6
          %s316 = smul.addr %s315, 8
          %s317 = scalar_lea.vmem %s4, %s316
        $region36: #{multi_loss.2} parent=31 // pred_fallthru
          _
        // Predicated region
        $region37: #{multi_loss.2} parent=31 // pred_check
          %p318 = pneg %p148
        $region38: #{multi_loss.2} parent=31 // pred_check_branch
          %320 = sbr.rel (%p318) target = $region40
        $region39: #{multi_loss.2} parent=31 // pred_region
          %p321 = scmp.lt.s32.totalorder %s18, 1
          %s322 = scalar_select %p321, %s18, 1
          %s323 = smul.addr %s322, 6
          %s324 = smul.addr %s323, 8
          %s325 = scalar_lea.vmem %s5, %s324
        $region40: #{multi_loss.2} parent=31 // pred_fallthru
          _
      $region32: #{multi_loss.2} parent=5 // pred_fallthru
        _
      %p326 = scmp.le.s32.totalorder 1, %s18
      %p327 = scmp.lt.s32.totalorder %s18, 3
      %p328 = pnand %p326, %p327
      %p329 = pneg %p328
      // Predicated region
      $region41: #{multi_loss.2} parent=5 // pred_check
        _
      $region42: #{multi_loss.2} parent=5 // pred_check_branch
        %331 = sbr.rel (%p328) target = $region44
      $region43: #{multi_loss.2} parent=5 // pred_region
        %s332 = ssub.s32 %s18, 1
        %p333 = pneg %p39
        %p334 = pneg %p36
        %p335 = pneg %p60
        %p336 = pneg %p57
        %p337 = pneg %p81
        %p338 = pneg %p78
        %p339 = pneg %p102
        %p340 = pneg %p99
        %p341 = scmp.lt.s32.totalorder %s23, 1
        %s342 = scalar_select %p341, %s23, 1
        %s343 = smul.addr %s342, 6
        %s344 = smul.addr %s343, 8
        %s345 = scalar_lea.vmem %s4, %s344
        %p346 = pneg %p128
        %p347 = pneg %p125
        %p348 = scmp.lt.s32.totalorder %s23, 1
        %s349 = scalar_select %p348, %s23, 1
        %s350 = smul.addr %s349, 6
        %s351 = smul.addr %s350, 8
        %s352 = scalar_lea.vmem %s5, %s351
        %p353 = pneg %p154
        %p354 = pneg %p151
        %p355 = pneg %p180
        %p356 = pneg %p177
        %p357 = scmp.lt.s32.totalorder %s23, 1
        %s358 = scalar_select %p357, %s23, 1
        %s359 = smul.addr %s358, 6
        %s360 = smul.addr %s359, 2
        %s361 = scalar_lea.vmem %s6, %s360
        %p362 = pneg %p206
        %p363 = pneg %p203
        %p364 = scmp.lt.s32.totalorder %s23, 1
        %s365 = scalar_select %p364, %s23, 1
        %s366 = smul.addr %s365, 6
        %s367 = smul.addr %s366, 4
        %s368 = scalar_lea.vmem %s7, %s367
        %p369 = pneg %p232
        %p370 = pneg %p229
        %p371 = scmp.lt.s32.totalorder %s23, 1
        %s372 = scalar_select %p371, %s23, 1
        %s373 = smul.addr %s372, 6
        %s374 = smul.addr %s373, 8
        %s375 = scalar_lea.vmem %s8, %s374
        %p376 = pneg %p258
        %p377 = pneg %p255
        %p378 = scmp.lt.s32.totalorder %s23, 1
        %s379 = scalar_select %p378, %s23, 1
        %s380 = smul.addr %s379, 12
        %s381 = smul.addr %s380, 8
        %s382 = scalar_lea.vmem %s9, %s381
        %p383 = pneg %p279
        %p384 = pneg %p276
        %p385 = scmp.lt.s32.totalorder %s23, 1
        %s386 = scalar_select %p385, %s23, 1
        %s387 = smul.addr %s386, 6
        %s388 = smul.addr %s387, 8
        %s389 = scalar_lea.vmem %s4, %s388
        %p390 = scmp.lt.s32.totalorder %s23, 1
        %s391 = scalar_select %p390, %s23, 1
        %s392 = smul.addr %s391, 6
        %s393 = smul.addr %s392, 8
        %s394 = scalar_lea.vmem %s5, %s393
        %p395 = scmp.lt.s32.totalorder %s23, 1
        %s396 = scalar_select %p395, %s23, 1
        %s397 = smul.addr %s396, 6
        %s398 = smul.addr %s397, 2
        %s399 = scalar_lea.vmem %s6, %s398
        %p400 = scmp.lt.s32.totalorder %s23, 1
        %s401 = scalar_select %p400, %s23, 1
        %s402 = smul.addr %s401, 6
        %s403 = smul.addr %s402, 4
        %s404 = scalar_lea.vmem %s7, %s403
        %p405 = scmp.lt.s32.totalorder %s23, 1
        %s406 = scalar_select %p405, %s23, 1
        %s407 = smul.addr %s406, 6
        %s408 = smul.addr %s407, 8
        %s409 = scalar_lea.vmem %s8, %s408
        %p410 = scmp.lt.s32.totalorder %s23, 1
        %s411 = scalar_select %p410, %s23, 1
        %s412 = smul.addr %s411, 12
        %s413 = smul.addr %s412, 8
        %s414 = scalar_lea.vmem %s9, %s413
        %p415 = scmp.eq.s32.totalorder %s23, 0
        // Predicated region
        $region45: #{multi_loss.2} parent=43 // pred_check
          %p416 = pneg %p415
        $region46: #{multi_loss.2} parent=43 // pred_check_branch
          %418 = sbr.rel (%p416) target = $region48
        $region47: #{multi_loss.2} parent=43 // pred_region
          %vm419 = vcmask 0
          %420 = vst.msk [vmem:[#allocation2] sm:$0x1] %vm419, 0.0
        $region48: #{multi_loss.2} parent=43 // pred_fallthru
          _
        %v421 = vld [vmem:[%s389] sm:$0xff]
        %v422 = vld [vmem:[%s389 + $0x8] sm:$0xff]
        %s423 = scalar_lea.vmem %s389, 16
        %v424 = vld [vmem:[%s423] sm:$0xff]
        %v425 = vld [vmem:[%s423 + $0x8] sm:$0xff]
        %s426 = scalar_lea.vmem %s389, 32
        %v427 = vld [vmem:[%s426] sm:$0xff]
        %v428 = vld [vmem:[%s426 + $0x8] sm:$0xff]
        %v429 = vld [vmem:[%s394] sm:$0xff]
        %v430 = vld [vmem:[%s394 + $0x8] sm:$0xff]
        %s431 = scalar_lea.vmem %s394, 16
        %v432 = vld [vmem:[%s431] sm:$0xff]
        %v433 = vld [vmem:[%s431 + $0x8] sm:$0xff]
        %s434 = scalar_lea.vmem %s394, 32
        %v435 = vld [vmem:[%s434] sm:$0xff]
        %v436 = vld [vmem:[%s434 + $0x8] sm:$0xff]
        %439 = vrot.lane.b32.xlu0 %v424, 16
        %v440 = vpop.permute.xlu0 %439
        %441 = vrot.lane.b32.xlu0 %v425, 16
        %v442 = vpop.permute.xlu0 %441
        %447 = vrot.lane.b32.xlu0 %v427, 32
        %v448 = vpop.permute.xlu0 %447
        %449 = vrot.lane.b32.xlu0 %v428, 32
        %v450 = vpop.permute.xlu0 %449
        %455 = vrot.lane.b32.xlu0 %v429, 48
        %v456 = vpop.permute.xlu0 %455
        %457 = vrot.lane.b32.xlu0 %v430, 48
        %v458 = vpop.permute.xlu0 %457
        %463 = vrot.lane.b32.xlu0 %v432, 64
        %v464 = vpop.permute.xlu0 %463
        %465 = vrot.lane.b32.xlu0 %v433, 64
        %v466 = vpop.permute.xlu0 %465
        %471 = vrot.lane.b32.xlu0 %v435, 80
        %v472 = vpop.permute.xlu0 %471
        %473 = vrot.lane.b32.xlu0 %v436, 80
        %v474 = vpop.permute.xlu0 %473
        %vm477 = vcmask 130048
        %v478 = vsel %vm477, %v421, %v440
        %v479 = vsel %vm477, %v422, %v442
        %vm480 = vcmask 261120
        %v481 = vsel %vm480, %v478, %v448
        %v482 = vsel %vm480, %v479, %v450
        %vm483 = vcmask 392192
        %v484 = vsel %vm483, %v481, %v456
        %v485 = vsel %vm483, %v482, %v458
        %vm486 = vcmask 523264
        %v487 = vsel %vm486, %v484, %v464
        %v488 = vsel %vm486, %v485, %v466
        %vm489 = vcmask 654336
        %v490 = vsel %vm489, %v487, %v472
        %v491 = vsel %vm489, %v488, %v474
        %v492 = vld [vmem:[%s0] sm:$0xff]
        %v493 = vld [vmem:[%s0 + $0x8] sm:$0x3f]
        %v495 = vsel %vm477, %v492, 0
        %v498 = vsel %vm477, %v493, 0
        %500 = vmatprep.subr.mxu0 0.0
        %501 = vmatpush1.msra.mxu0 %v490
        %502 = vmatprep.subr.mxu0 0.0
        %503 = vmatpush1.msra.mxu0 %v491
        %504 = vmatprep.subr.mxu0 0.0
        %505 = vmatpush1.msra.mxu0 0.0
        %506 = vmatprep.subr.mxu0 0.0
        %507 = vmatpush1.msra.mxu0 0.0
        %508 = vmatprep.subr.mxu0 0.0
        %509 = vmatpush1.msra.mxu0 0.0
        %510 = vmatprep.subr.mxu0 0.0
        %511 = vmatpush1.msra.mxu0 0.0
        %512 = vmatprep.subr.mxu0 0.0
        %513 = vmatpush1.msra.mxu0 0.0
        %514 = vmatprep.subr.mxu0 0.0
        %515 = vmatpush1.msra.mxu0 0.0
        %516 = vmatprep.subr.mxu0 0.0
        %517 = vmatpush1.msra.mxu0 0.0
        %518 = vmatprep.subr.mxu0 0.0
        %519 = vmatpush1.msra.mxu0 0.0
        %520 = vmatprep.subr.mxu0 0.0
        %521 = vmatpush1.msra.mxu0 0.0
        %522 = vmatprep.subr.mxu0 0.0
        %523 = vmatpush1.msra.mxu0 0.0
        %524 = vmatprep.subr.mxu0 0.0
        %525 = vmatpush1.msra.mxu0 0.0
        %526 = vmatprep.subr.mxu0 0.0
        %527 = vmatpush1.msra.mxu0 0.0
        %528 = vmatprep.subr.mxu0 0.0
        %529 = vmatpush1.msra.mxu0 0.0
        %530 = vmatprep.subr.mxu0 0.0
        %531 = vmatpush1.msra.mxu0 0.0
        %532 = vmatprep.subr.mxu0 0.0
        %533 = vmatpush1.msra.mxu0 0.0
        %534 = vmatprep.subr.mxu0 0.0
        %535 = vmatpush1.msra.mxu0 0.0
        %536 = vmatprep.subr.mxu0 0.0
        %537 = vmatpush1.msra.mxu0 0.0
        %538 = vmatprep.subr.mxu0 0.0
        %539 = vmatpush1.msra.mxu0 0.0
        %540 = vmatprep.subr.mxu0 0.0
        %541 = vmatpush1.msra.mxu0 0.0
        %542 = vmatprep.subr.mxu0 0.0
        %543 = vmatpush1.msra.mxu0 0.0
        %544 = vmatprep.subr.mxu0 0.0
        %545 = vmatpush1.msra.mxu0 0.0
        %546 = vmatprep.subr.mxu0 0.0
        %547 = vmatpush1.msra.mxu0 0.0
        %548 = vmatprep.subr.mxu0 0.0
        %549 = vmatpush1.msra.mxu0 0.0
        %550 = vmatprep.subr.mxu0 0.0
        %551 = vmatpush1.msra.mxu0 0.0
        %552 = vmatprep.subr.mxu0 0.0
        %553 = vmatpush1.msra.mxu0 0.0
        %554 = vmatprep.subr.mxu0 0.0
        %555 = vmatpush1.msra.mxu0 0.0
        %556 = vmatprep.subr.mxu0 0.0
        %557 = vmatpush1.msra.mxu0 0.0
        %558 = vmatprep.subr.mxu0 0.0
        %559 = vmatpush1.msra.mxu0 0.0
        %560 = vmatprep.subr.mxu0 0.0
        %561 = vmatpush1.msra.mxu0 0.0
        %562 = vmatprep.subr.mxu0 0.0
        %563 = vmatpush1.msra.mxu0 0.0
        %564 = vmatprep.mubr.f32.mxu0 0.0
        %565 = vmatmul.mubr.f32.gmra.mrb[0].mxu0 %v495
        %v566 = vpop.f32.mrb[0].mxu0
        %v567 = vadd.f32 0.0, %v566
        %v568 = vpop.f32.mrb[0].mxu0
        %569 = vmatprep.mubr.f32.mxu0 0.0
        %570 = vmatmul.mubr.f32.gmra.mrb[0].mxu0 %v498
        %v571 = vpop.f32.mrb[0].mxu0
        %v572 = vadd.f32 0.0, %v571
        %v573 = vpop.f32.mrb[0].mxu0
        %574 = vdwg.mxu0
        %v575 = vld [vmem:[%s1] sm:$0xff]
        %v576 = vld [vmem:[%s1 + $0x8] sm:$0xff]
        %v577 = vld [vmem:[%s1 + $0x10] sm:$0xff]
        %v578 = vld [vmem:[%s1 + $0x18] sm:$0xff]
        %v579 = vld [vmem:[%s1 + $0x20] sm:$0xff]
        %v580 = vld [vmem:[%s1 + $0x28] sm:$0xff]
        %v581 = vld [vmem:[%s1 + $0x30] sm:$0xff]
        %v582 = vld [vmem:[%s1 + $0x38] sm:$0xff]
        %v583 = vld [vmem:[%s1 + $0x40] sm:$0xff]
        %v584 = vld [vmem:[%s1 + $0x48] sm:$0xff]
        %v585 = vld [vmem:[%s1 + $0x50] sm:$0xff]
        %v586 = vld [vmem:[%s1 + $0x58] sm:$0xff]
        %vm587 = vcmask 785408
        %v589 = vsel %vm587, %v567, 0
        %591 = vmatprep.subr.mxu0 0.0
        %592 = vmatpush1.msra.mxu0 %v575
        %593 = vmatprep.subr.mxu0 0.0
        %594 = vmatpush1.msra.mxu0 %v576
        %595 = vmatprep.subr.mxu0 0.0
        %596 = vmatpush1.msra.mxu0 %v577
        %597 = vmatprep.subr.mxu0 0.0
        %598 = vmatpush1.msra.mxu0 %v578
        %599 = vmatprep.subr.mxu0 0.0
        %600 = vmatpush1.msra.mxu0 %v579
        %601 = vmatprep.subr.mxu0 0.0
        %602 = vmatpush1.msra.mxu0 %v580
        %603 = vmatprep.subr.mxu0 0.0
        %604 = vmatpush1.msra.mxu0 %v581
        %605 = vmatprep.subr.mxu0 0.0
        %606 = vmatpush1.msra.mxu0 %v582
        %607 = vmatprep.subr.mxu0 0.0
        %608 = vmatpush1.msra.mxu0 %v583
        %609 = vmatprep.subr.mxu0 0.0
        %610 = vmatpush1.msra.mxu0 %v584
        %611 = vmatprep.subr.mxu0 0.0
        %612 = vmatpush1.msra.mxu0 %v585
        %613 = vmatprep.subr.mxu0 0.0
        %614 = vmatpush1.msra.mxu0 %v586
        %615 = vmatprep.subr.mxu0 0.0
        %616 = vmatpush1.msra.mxu0 0.0
        %617 = vmatprep.subr.mxu0 0.0
        %618 = vmatpush1.msra.mxu0 0.0
        %619 = vmatprep.subr.mxu0 0.0
        %620 = vmatpush1.msra.mxu0 0.0
        %621 = vmatprep.subr.mxu0 0.0
        %622 = vmatpush1.msra.mxu0 0.0
        %623 = vmatprep.subr.mxu0 0.0
        %624 = vmatpush1.msra.mxu0 0.0
        %625 = vmatprep.subr.mxu0 0.0
        %626 = vmatpush1.msra.mxu0 0.0
        %627 = vmatprep.subr.mxu0 0.0
        %628 = vmatpush1.msra.mxu0 0.0
        %629 = vmatprep.subr.mxu0 0.0
        %630 = vmatpush1.msra.mxu0 0.0
        %631 = vmatprep.subr.mxu0 0.0
        %632 = vmatpush1.msra.mxu0 0.0
        %633 = vmatprep.subr.mxu0 0.0
        %634 = vmatpush1.msra.mxu0 0.0
        %635 = vmatprep.subr.mxu0 0.0
        %636 = vmatpush1.msra.mxu0 0.0
        %637 = vmatprep.subr.mxu0 0.0
        %638 = vmatpush1.msra.mxu0 0.0
        %639 = vmatprep.subr.mxu0 0.0
        %640 = vmatpush1.msra.mxu0 0.0
        %641 = vmatprep.subr.mxu0 0.0
        %642 = vmatpush1.msra.mxu0 0.0
        %643 = vmatprep.subr.mxu0 0.0
        %644 = vmatpush1.msra.mxu0 0.0
        %645 = vmatprep.subr.mxu0 0.0
        %646 = vmatpush1.msra.mxu0 0.0
        %647 = vmatprep.subr.mxu0 0.0
        %648 = vmatpush1.msra.mxu0 0.0
        %649 = vmatprep.subr.mxu0 0.0
        %650 = vmatpush1.msra.mxu0 0.0
        %651 = vmatprep.subr.mxu0 0.0
        %652 = vmatpush1.msra.mxu0 0.0
        %653 = vmatprep.subr.mxu0 0.0
        %654 = vmatpush1.msra.mxu0 0.0
        %655 = vmatprep.mubr.f32.mxu0 0.0
        %656 = vmatmul.mubr.f32.gmra.mrb[0].mxu0 %v589
        %v657 = vpop.f32.mrb[0].mxu0
        %v658 = vadd.f32 0.0, %v657
        %v659 = vpop.f32.mrb[0].mxu0
        %660 = vdwg.mxu0
        %662 = vrot.lane.b32.xlu0 %v658, 122
        %v663 = vpop.permute.xlu0 %662
        %v665 = vsub.f32 %v658, %v663
        %v666 = vand.u32 2147483647, %v665
        %vm667 = vcmask 41984
        %v668 = vsel %vm667, %v666, 0.0
        %669 = vadd.xlane.f32.xlu0 %v668
        %v670 = vpop.xlane.xlu0 %669
        %v671 = vrot.slane %v670, 4
        %v672 = vadd.f32 %v670, %v671
        %v673 = vrot.slane %v672, 2
        %v674 = vadd.f32 %v672, %v673
        %v675 = vrot.slane %v674, 1
        %v676 = vadd.f32 %v674, %v675
        %s677 = vtos %v676
        %s678 = smul.f32 %s677, 0.020833334
        %s679 = sadd.f32 %s678, 0.0
        %v680 = vsub.f32 %v658, 0.485
        %v681 = vmul.f32 %v680, 4.366812
        %vm682 = vcmask 9216
        %683 = vst.msk [vmem:[%s399] sm:$0x3] %vm682, %v681
        %v684 = vsub.f32 %v658, 0.456
        %v685 = vmul.f32 %v684, 4.464286
        %687 = vrot.lane.b32.xlu0 %v685, 126
        %v688 = vpop.permute.xlu0 %687
        %s690 = scalar_lea.vmem %s399, 2
        %691 = vst.msk [vmem:[%s690] sm:$0x3] %vm682, %v688
        %v692 = vsub.f32 %v658, 0.406
        %v693 = vmul.f32 %v692, 4.4444447
        %695 = vrot.lane.b32.xlu0 %v693, 124
        %v696 = vpop.permute.xlu0 %695
        %s698 = scalar_lea.vmem %s399, 4
        %699 = vst.msk [vmem:[%s698] sm:$0x3] %vm682, %v696
        %701 = vrot.lane.b32.xlu0 %v681, 122
        %v702 = vpop.permute.xlu0 %701
        %s704 = scalar_lea.vmem %s399, 6
        %705 = vst.msk [vmem:[%s704] sm:$0x3] %vm682, %v702
        %706 = vrot.lane.b32.xlu0 %v685, 120
        %v707 = vpop.permute.xlu0 %706
        %s709 = scalar_lea.vmem %s399, 8
        %710 = vst.msk [vmem:[%s709] sm:$0x3] %vm682, %v707
        %711 = vrot.lane.b32.xlu0 %v693, 118
        %v712 = vpop.permute.xlu0 %711
        %s714 = scalar_lea.vmem %s399, 10
        %715 = vst.msk [vmem:[%s714] sm:$0x3] %vm682, %v712
        %v716 = vld [vmem:[%s2] sm:$0xff]
        %v717 = vld [vmem:[%s2 + $0x8] sm:$0xff]
        %v718 = vld [vmem:[%s2 + $0x10] sm:$0xff]
        %v719 = vld [vmem:[%s2 + $0x18] sm:$0xff]
        %v720 = vld [vmem:[%s2 + $0x20] sm:$0xff]
        %v721 = vld [vmem:[%s2 + $0x28] sm:$0xff]
        %v722 = vld [vmem:[%s2 + $0x30] sm:$0xff]
        %v723 = vld [vmem:[%s2 + $0x38] sm:$0xff]
        %v724 = vld [vmem:[%s2 + $0x40] sm:$0xff]
        %v725 = vld [vmem:[%s2 + $0x48] sm:$0xff]
        %v726 = vld [vmem:[%s2 + $0x50] sm:$0xff]
        %v727 = vld [vmem:[%s2 + $0x58] sm:$0xff]
        %v728 = vrot.slane %v567, 2
        %v729 = vsel %vm587, %v728, 0
        %731 = vmatprep.subr.mxu0 0.0
        %732 = vmatpush1.msra.mxu0 %v716
        %733 = vmatprep.subr.mxu0 0.0
        %734 = vmatpush1.msra.mxu0 %v717
        %735 = vmatprep.subr.mxu0 0.0
        %736 = vmatpush1.msra.mxu0 %v718
        %737 = vmatprep.subr.mxu0 0.0
        %738 = vmatpush1.msra.mxu0 %v719
        %739 = vmatprep.subr.mxu0 0.0
        %740 = vmatpush1.msra.mxu0 %v720
        %741 = vmatprep.subr.mxu0 0.0
        %742 = vmatpush1.msra.mxu0 %v721
        %743 = vmatprep.subr.mxu0 0.0
        %744 = vmatpush1.msra.mxu0 %v722
        %745 = vmatprep.subr.mxu0 0.0
        %746 = vmatpush1.msra.mxu0 %v723
        %747 = vmatprep.subr.mxu0 0.0
        %748 = vmatpush1.msra.mxu0 %v724
        %749 = vmatprep.subr.mxu0 0.0
        %750 = vmatpush1.msra.mxu0 %v725
        %751 = vmatprep.subr.mxu0 0.0
        %752 = vmatpush1.msra.mxu0 %v726
        %753 = vmatprep.subr.mxu0 0.0
        %754 = vmatpush1.msra.mxu0 %v727
        %755 = vmatprep.subr.mxu0 0.0
        %756 = vmatpush1.msra.mxu0 0.0
        %757 = vmatprep.subr.mxu0 0.0
        %758 = vmatpush1.msra.mxu0 0.0
        %759 = vmatprep.subr.mxu0 0.0
        %760 = vmatpush1.msra.mxu0 0.0
        %761 = vmatprep.subr.mxu0 0.0
        %762 = vmatpush1.msra.mxu0 0.0
        %763 = vmatprep.subr.mxu0 0.0
        %764 = vmatpush1.msra.mxu0 0.0
        %765 = vmatprep.subr.mxu0 0.0
        %766 = vmatpush1.msra.mxu0 0.0
        %767 = vmatprep.subr.mxu0 0.0
        %768 = vmatpush1.msra.mxu0 0.0
        %769 = vmatprep.subr.mxu0 0.0
        %770 = vmatpush1.msra.mxu0 0.0
        %771 = vmatprep.subr.mxu0 0.0
        %772 = vmatpush1.msra.mxu0 0.0
        %773 = vmatprep.subr.mxu0 0.0
        %774 = vmatpush1.msra.mxu0 0.0
        %775 = vmatprep.subr.mxu0 0.0
        %776 = vmatpush1.msra.mxu0 0.0
        %777 = vmatprep.subr.mxu0 0.0
        %778 = vmatpush1.msra.mxu0 0.0
        %779 = vmatprep.subr.mxu0 0.0
        %780 = vmatpush1.msra.mxu0 0.0
        %781 = vmatprep.subr.mxu0 0.0
        %782 = vmatpush1.msra.mxu0 0.0
        %783 = vmatprep.subr.mxu0 0.0
        %784 = vmatpush1.msra.mxu0 0.0
        %785 = vmatprep.subr.mxu0 0.0
        %786 = vmatpush1.msra.mxu0 0.0
        %787 = vmatprep.subr.mxu0 0.0
        %788 = vmatpush1.msra.mxu0 0.0
        %789 = vmatprep.subr.mxu0 0.0
        %790 = vmatpush1.msra.mxu0 0.0
        %791 = vmatprep.subr.mxu0 0.0
        %792 = vmatpush1.msra.mxu0 0.0
        %793 = vmatprep.subr.mxu0 0.0
        %794 = vmatpush1.msra.mxu0 0.0
        %795 = vmatprep.mubr.f32.mxu0 0.0
        %796 = vmatmul.mubr.f32.gmra.mrb[0].mxu0 %v729
        %v797 = vpop.f32.mrb[0].mxu0
        %v798 = vadd.f32 0.0, %v797
        %v799 = vpop.f32.mrb[0].mxu0
        %800 = vdwg.mxu0
        %802 = vrot.lane.b32.xlu0 %v798, 116
        %v803 = vpop.permute.xlu0 %802
        %v805 = vsub.f32 %v798, %v803
        %v806 = vand.u32 2147483647, %v805
        %vm807 = vcmask 93184
        %v808 = vsel %vm807, %v806, 0.0
        %809 = vadd.xlane.f32.xlu0 %v808
        %v810 = vpop.xlane.xlu0 %809
        %v811 = vrot.slane %v810, 4
        %v812 = vadd.f32 %v810, %v811
        %v813 = vrot.slane %v812, 2
        %v814 = vadd.f32 %v812, %v813
        %v815 = vrot.slane %v814, 1
        %v816 = vadd.f32 %v814, %v815
        %s817 = vtos %v816
        %s818 = smul.f32 %s817, 0.010416667
        %s819 = sadd.f32 %s679, %s818
        %v820 = vsub.f32 %v798, 0.485
        %v821 = vmul.f32 %v820, 4.366812
        %vm822 = vcmask 27648
        %823 = vst.msk [vmem:[%s404] sm:$0xf] %vm822, %v821
        %v824 = vsub.f32 %v798, 0.456
        %v825 = vmul.f32 %v824, 4.464286
        %827 = vrot.lane.b32.xlu0 %v825, 124
        %v828 = vpop.permute.xlu0 %827
        %s830 = scalar_lea.vmem %s404, 4
        %831 = vst.msk [vmem:[%s830] sm:$0xf] %vm822, %v828
        %v832 = vsub.f32 %v798, 0.406
        %v833 = vmul.f32 %v832, 4.4444447
        %835 = vrot.lane.b32.xlu0 %v833, 120
        %v836 = vpop.permute.xlu0 %835
        %s838 = scalar_lea.vmem %s404, 8
        %839 = vst.msk [vmem:[%s838] sm:$0xf] %vm822, %v836
        %841 = vrot.lane.b32.xlu0 %v821, 116
        %v842 = vpop.permute.xlu0 %841
        %s844 = scalar_lea.vmem %s404, 12
        %845 = vst.msk [vmem:[%s844] sm:$0xf] %vm822, %v842
        %846 = vrot.lane.b32.xlu0 %v825, 112
        %v847 = vpop.permute.xlu0 %846
        %s849 = scalar_lea.vmem %s404, 16
        %850 = vst.msk [vmem:[%s849] sm:$0xf] %vm822, %v847
        %851 = vrot.lane.b32.xlu0 %v833, 108
        %v852 = vpop.permute.xlu0 %851
        %s854 = scalar_lea.vmem %s404, 20
        %855 = vst.msk [vmem:[%s854] sm:$0xf] %vm822, %v852
        %v856 = vld [vmem:[%s3] sm:$0xff]
        %v857 = vld [vmem:[%s3 + $0x8] sm:$0xff]
        %v858 = vld [vmem:[%s3 + $0x10] sm:$0xff]
        %v859 = vld [vmem:[%s3 + $0x18] sm:$0xff]
        %v860 = vld [vmem:[%s3 + $0x20] sm:$0xff]
        %v861 = vld [vmem:[%s3 + $0x28] sm:$0xff]
        %v862 = vld [vmem:[%s3 + $0x30] sm:$0xff]
        %v863 = vld [vmem:[%s3 + $0x38] sm:$0xff]
        %v864 = vld [vmem:[%s3 + $0x40] sm:$0xff]
        %v865 = vld [vmem:[%s3 + $0x48] sm:$0xff]
        %v866 = vld [vmem:[%s3 + $0x50] sm:$0xff]
        %v867 = vld [vmem:[%s3 + $0x58] sm:$0xff]
        %vm869 = vcmask 1041408
        %v870 = vrot.slane %v567, 6
        %v871 = vrot.slane %v572, 6
        %v872 = vsel %vm869, %v870, %v871
        %v873 = vsel %vm587, %v872, 0
        %875 = vmatprep.subr.mxu0 0.0
        %876 = vmatpush1.msra.mxu0 %v856
        %877 = vmatprep.subr.mxu0 0.0
        %878 = vmatpush1.msra.mxu0 %v857
        %879 = vmatprep.subr.mxu0 0.0
        %880 = vmatpush1.msra.mxu0 %v858
        %881 = vmatprep.subr.mxu0 0.0
        %882 = vmatpush1.msra.mxu0 %v859
        %883 = vmatprep.subr.mxu0 0.0
        %884 = vmatpush1.msra.mxu0 %v860
        %885 = vmatprep.subr.mxu0 0.0
        %886 = vmatpush1.msra.mxu0 %v861
        %887 = vmatprep.subr.mxu0 0.0
        %888 = vmatpush1.msra.mxu0 %v862
        %889 = vmatprep.subr.mxu0 0.0
        %890 = vmatpush1.msra.mxu0 %v863
        %891 = vmatprep.subr.mxu0 0.0
        %892 = vmatpush1.msra.mxu0 %v864
        %893 = vmatprep.subr.mxu0 0.0
        %894 = vmatpush1.msra.mxu0 %v865
        %895 = vmatprep.subr.mxu0 0.0
        %896 = vmatpush1.msra.mxu0 %v866
        %897 = vmatprep.subr.mxu0 0.0
        %898 = vmatpush1.msra.mxu0 %v867
        %899 = vmatprep.subr.mxu0 0.0
        %900 = vmatpush1.msra.mxu0 0.0
        %901 = vmatprep.subr.mxu0 0.0
        %902 = vmatpush1.msra.mxu0 0.0
        %903 = vmatprep.subr.mxu0 0.0
        %904 = vmatpush1.msra.mxu0 0.0
        %905 = vmatprep.subr.mxu0 0.0
        %906 = vmatpush1.msra.mxu0 0.0
        %907 = vmatprep.subr.mxu0 0.0
        %908 = vmatpush1.msra.mxu0 0.0
        %909 = vmatprep.subr.mxu0 0.0
        %910 = vmatpush1.msra.mxu0 0.0
        %911 = vmatprep.subr.mxu0 0.0
        %912 = vmatpush1.msra.mxu0 0.0
        %913 = vmatprep.subr.mxu0 0.0
        %914 = vmatpush1.msra.mxu0 0.0
        %915 = vmatprep.subr.mxu0 0.0
        %916 = vmatpush1.msra.mxu0 0.0
        %917 = vmatprep.subr.mxu0 0.0
        %918 = vmatpush1.msra.mxu0 0.0
        %919 = vmatprep.subr.mxu0 0.0
        %920 = vmatpush1.msra.mxu0 0.0
        %921 = vmatprep.subr.mxu0 0.0
        %922 = vmatpush1.msra.mxu0 0.0
        %923 = vmatprep.subr.mxu0 0.0
        %924 = vmatpush1.msra.mxu0 0.0
        %925 = vmatprep.subr.mxu0 0.0
        %926 = vmatpush1.msra.mxu0 0.0
        %927 = vmatprep.subr.mxu0 0.0
        %928 = vmatpush1.msra.mxu0 0.0
        %929 = vmatprep.subr.mxu0 0.0
        %930 = vmatpush1.msra.mxu0 0.0
        %931 = vmatprep.subr.mxu0 0.0
        %932 = vmatpush1.msra.mxu0 0.0
        %933 = vmatprep.subr.mxu0 0.0
        %934 = vmatpush1.msra.mxu0 0.0
        %935 = vmatprep.subr.mxu0 0.0
        %936 = vmatpush1.msra.mxu0 0.0
        %937 = vmatprep.subr.mxu0 0.0
        %938 = vmatpush1.msra.mxu0 0.0
        %939 = vmatprep.mubr.f32.mxu0 0.0
        %940 = vmatmul.mubr.f32.gmra.mrb[0].mxu0 %v873
        %v941 = vpop.f32.mrb[0].mxu0
        %v942 = vadd.f32 0.0, %v941
        %v943 = vpop.f32.mrb[0].mxu0
        %944 = vdwg.mxu0
        %946 = vrot.lane.b32.xlu0 %v942, 104
        %v947 = vpop.permute.xlu0 %946
        %v949 = vsub.f32 %v942, %v947
        %v950 = vand.u32 2147483647, %v949
        %vm951 = vcmask 195584
        %v952 = vsel %vm951, %v950, 0.0
        %953 = vadd.xlane.f32.xlu0 %v952
        %v954 = vpop.xlane.xlu0 %953
        %v955 = vrot.slane %v954, 4
        %v956 = vadd.f32 %v954, %v955
        %v957 = vrot.slane %v956, 2
        %v958 = vadd.f32 %v956, %v957
        %v959 = vrot.slane %v958, 1
        %v960 = vadd.f32 %v958, %v959
        %s961 = vtos %v960
        %s962 = smul.f32 %s961, 0.0052083335
        %s963 = sadd.f32 %s819, %s962
        %v964 = vsub.f32 %v942, 0.485
        %v965 = vmul.f32 %v964, 4.366812
        %vm966 = vcmask 64512
        %967 = vst.msk [vmem:[%s409] sm:$0xff] %vm966, %v965
        %v968 = vsub.f32 %v942, 0.456
        %v969 = vmul.f32 %v968, 4.464286
        %971 = vrot.lane.b32.xlu0 %v969, 120
        %v972 = vpop.permute.xlu0 %971
        %s974 = scalar_lea.vmem %s409, 8
        %975 = vst.msk [vmem:[%s974] sm:$0xff] %vm966, %v972
        %v976 = vsub.f32 %v942, 0.406
        %v977 = vmul.f32 %v976, 4.4444447
        %979 = vrot.lane.b32.xlu0 %v977, 112
        %v980 = vpop.permute.xlu0 %979
        %s982 = scalar_lea.vmem %s409, 16
        %983 = vst.msk [vmem:[%s982] sm:$0xff] %vm966, %v980
        %985 = vrot.lane.b32.xlu0 %v965, 104
        %v986 = vpop.permute.xlu0 %985
        %s988 = scalar_lea.vmem %s409, 24
        %989 = vst.msk [vmem:[%s988] sm:$0xff] %vm966, %v986
        %990 = vrot.lane.b32.xlu0 %v969, 96
        %v991 = vpop.permute.xlu0 %990
        %s993 = scalar_lea.vmem %s409, 32
        %994 = vst.msk [vmem:[%s993] sm:$0xff] %vm966, %v991
        %995 = vrot.lane.b32.xlu0 %v977, 88
        %v996 = vpop.permute.xlu0 %995
        %s998 = scalar_lea.vmem %s409, 40
        %999 = vst.msk [vmem:[%s998] sm:$0xff] %vm966, %v996
        %1002 = vrot.lane.b32.xlu0 %v490, 80
        %v1003 = vpop.permute.xlu0 %1002
        %1004 = vrot.lane.b32.xlu0 %v491, 80
        %v1005 = vpop.permute.xlu0 %1004
        %v1008 = vsub.f32 %v490, %v1003
        %v1009 = vsub.f32 %v491, %v1005
        %v1010 = vand.u32 2147483647, %v1008
        %v1011 = vand.u32 2147483647, %v1009
        %v1012 = vsel %vm483, %v1010, 0.0
        %v1013 = vsel %vm483, %v1011, 0.0
        %v1014 = vadd.f32 %v1012, %v1013
        %1015 = vadd.xlane.f32.xlu0 %v1014
        %v1016 = vpop.xlane.xlu0 %1015
        %v1017 = vrot.slane %v1016, 4
        %v1018 = vadd.f32 %v1016, %v1017
        %v1019 = vrot.slane %v1018, 2
        %v1020 = vadd.f32 %v1018, %v1019
        %v1021 = vrot.slane %v1020, 1
        %v1022 = vadd.f32 %v1020, %v1021
        %s1023 = vtos %v1022
        %s1024 = smul.f32 %s1023, 0.0026041667
        %s1025 = sadd.f32 %s963, %s1024
        %v1026 = vsub.f32 %v490, 0.485
        %v1027 = vsub.f32 %v491, 0.485
        %v1028 = vmul.f32 %v1026, 4.366812
        %v1029 = vmul.f32 %v1027, 4.366812
        %1030 = vst.msk [vmem:[%s414] sm:$0xff] %vm477, %v1028
        %1031 = vst.msk [vmem:[%s414 + $0x8] sm:$0xff] %vm477, %v1029
        %v1032 = vsub.f32 %v490, 0.456
        %v1033 = vsub.f32 %v491, 0.456
        %v1034 = vmul.f32 %v1032, 4.464286
        %v1035 = vmul.f32 %v1033, 4.464286
        %1038 = vrot.lane.b32.xlu0 %v1034, 112
        %v1039 = vpop.permute.xlu0 %1038
        %1040 = vrot.lane.b32.xlu0 %v1035, 112
        %v1041 = vpop.permute.xlu0 %1040
        %s1044 = scalar_lea.vmem %s414, 16
        %1045 = vst.msk [vmem:[%s1044] sm:$0xff] %vm477, %v1039
        %1046 = vst.msk [vmem:[%s1044 + $0x8] sm:$0xff] %vm477, %v1041
        %v1047 = vsub.f32 %v490, 0.406
        %v1048 = vsub.f32 %v491, 0.406
        %v1049 = vmul.f32 %v1047, 4.4444447
        %v1050 = vmul.f32 %v1048, 4.4444447
        %1053 = vrot.lane.b32.xlu0 %v1049, 96
        %v1054 = vpop.permute.xlu0 %1053
        %1055 = vrot.lane.b32.xlu0 %v1050, 96
        %v1056 = vpop.permute.xlu0 %1055
        %s1059 = scalar_lea.vmem %s414, 32
        %1060 = vst.msk [vmem:[%s1059] sm:$0xff] %vm477, %v1054
        %1061 = vst.msk [vmem:[%s1059 + $0x8] sm:$0xff] %vm477, %v1056
        %1064 = vrot.lane.b32.xlu0 %v1028, 80
        %v1065 = vpop.permute.xlu0 %1064
        %1066 = vrot.lane.b32.xlu0 %v1029, 80
        %v1067 = vpop.permute.xlu0 %1066
        %s1070 = scalar_lea.vmem %s414, 48
        %1071 = vst.msk [vmem:[%s1070] sm:$0xff] %vm477, %v1065
        %1072 = vst.msk [vmem:[%s1070 + $0x8] sm:$0xff] %vm477, %v1067
        %1073 = vrot.lane.b32.xlu0 %v1034, 64
        %v1074 = vpop.permute.xlu0 %1073
        %1075 = vrot.lane.b32.xlu0 %v1035, 64
        %v1076 = vpop.permute.xlu0 %1075
        %s1079 = scalar_lea.vmem %s414, 64
        %1080 = vst.msk [vmem:[%s1079] sm:$0xff] %vm477, %v1074
        %1081 = vst.msk [vmem:[%s1079 + $0x8] sm:$0xff] %vm477, %v1076
        %1082 = vrot.lane.b32.xlu0 %v1049, 48
        %v1083 = vpop.permute.xlu0 %1082
        %1084 = vrot.lane.b32.xlu0 %v1050, 48
        %v1085 = vpop.permute.xlu0 %1084
        %s1088 = scalar_lea.vmem %s414, 80
        %1089 = vst.msk [vmem:[%s1088] sm:$0xff] %vm477, %v1083
        %1090 = vst.msk [vmem:[%s1088 + $0x8] sm:$0xff] %vm477, %v1085
        %v1091 = vld [vmem:[#allocation2] sm:$0x1]
        %v1092 = vstv %s1025
        %v1093 = vadd.f32 %v1091, %v1092
        %vm1094 = vcmask 0
        %1095 = vst.msk [vmem:[#allocation2] sm:$0x1] %vm1094, %v1093
        %p1096 = scmp.lt.s32.totalorder %s23, 1
        %s1097 = scalar_select %p1096, %s23, 1
        %s1098 = smul.addr %s1097, 6
        %s1099 = smul.addr %s1098, 2
        %s1100 = scalar_lea.vmem %s6, %s1099
        %p1101 = scmp.lt.s32.totalorder %s23, 1
        %s1102 = scalar_select %p1101, %s23, 1
        %s1103 = smul.addr %s1102, 6
        %s1104 = smul.addr %s1103, 4
        %s1105 = scalar_lea.vmem %s7, %s1104
        %p1106 = scmp.lt.s32.totalorder %s23, 1
        %s1107 = scalar_select %p1106, %s23, 1
        %s1108 = smul.addr %s1107, 6
        %s1109 = smul.addr %s1108, 8
        %s1110 = scalar_lea.vmem %s8, %s1109
        %p1111 = scmp.lt.s32.totalorder %s23, 1
        %s1112 = scalar_select %p1111, %s23, 1
        %s1113 = smul.addr %s1112, 12
        %s1114 = smul.addr %s1113, 8
        %s1115 = scalar_lea.vmem %s9, %s1114
        // Predicated region
        $region49: #{multi_loss.2} parent=43 // pred_check
          %p1116 = pneg %p177
        $region50: #{multi_loss.2} parent=43 // pred_check_branch
          %1118 = sbr.rel (%p1116) target = $region52
        $region51: #{multi_loss.2} parent=43 // pred_region
          _
        $region52: #{multi_loss.2} parent=43 // pred_fallthru
          _
        // Predicated region
        $region53: #{multi_loss.2} parent=43 // pred_check
          %p1119 = pneg %p203
        $region54: #{multi_loss.2} parent=43 // pred_check_branch
          %1121 = sbr.rel (%p1119) target = $region56
        $region55: #{multi_loss.2} parent=43 // pred_region
          _
        $region56: #{multi_loss.2} parent=43 // pred_fallthru
          _
        // Predicated region
        $region57: #{multi_loss.2} parent=43 // pred_check
          %p1122 = pneg %p229
        $region58: #{multi_loss.2} parent=43 // pred_check_branch
          %1124 = sbr.rel (%p1122) target = $region60
        $region59: #{multi_loss.2} parent=43 // pred_region
          _
        $region60: #{multi_loss.2} parent=43 // pred_fallthru
          _
        // Predicated region
        $region61: #{multi_loss.2} parent=43 // pred_check
          %p1125 = pneg %p255
        $region62: #{multi_loss.2} parent=43 // pred_check_branch
          %1127 = sbr.rel (%p1125) target = $region64
        $region63: #{multi_loss.2} parent=43 // pred_region
          _
        $region64: #{multi_loss.2} parent=43 // pred_fallthru
          _
        // Predicated region
        $region65: #{multi_loss.2} parent=43 // pred_check
          %p1128 = pneg %p276
        $region66: #{multi_loss.2} parent=43 // pred_check_branch
          %1130 = sbr.rel (%p1128) target = $region68
        $region67: #{multi_loss.2} parent=43 // pred_region
          %s1132 = ssub.s32 16, 16
          %1133 = vsyncadd [#allocation3], %s1132
          %s1135 = sshll.u32 [#allocation2], 4
          %s1136 = int_to_ptr.vmem [resolvable:$true] %s1135
          %1138 = dma.vmem_to_hbm [thread:$0]  %s1136, 16, %s10, [#allocation3]
        $region68: #{multi_loss.2} parent=43 // pred_fallthru
          _
        // Predicated region
        $region69: #{multi_loss.2} parent=43 // pred_check
          %p1139 = pneg %p276
        $region70: #{multi_loss.2} parent=43 // pred_check_branch
          %1141 = sbr.rel (%p1139) target = $region72
        $region71: #{multi_loss.2} parent=43 // pred_region
          %1142 = dma.done [#allocation3], 16
        $region72: #{multi_loss.2} parent=43 // pred_fallthru
          _
      $region44: #{multi_loss.2} parent=5 // pred_fallthru
        _
      %p1143 = scmp.le.s32.totalorder 2, %s18
      // Predicated region
      $region73: #{multi_loss.2} parent=5 // pred_check
        %p1144 = pneg %p1143
      $region74: #{multi_loss.2} parent=5 // pred_check_branch
        %1146 = sbr.rel (%p1144) target = $region76
      $region75: #{multi_loss.2} parent=5 // pred_region
        %s1147 = ssub.s32 %s18, 2
        // Predicated region
        $region77: #{multi_loss.2} parent=75 // pred_check
          %p1148 = pneg %p183
        $region78: #{multi_loss.2} parent=75 // pred_check_branch
          %1150 = sbr.rel (%p1148) target = $region80
        $region79: #{multi_loss.2} parent=75 // pred_region
          %p1151 = scmp.lt.s32.totalorder %s24, 1
          %s1152 = scalar_select %p1151, %s24, 1
          %s1153 = smul.addr %s1152, 6
          %s1154 = smul.addr %s1153, 2
          %s1155 = scalar_lea.vmem %s6, %s1154
        $region80: #{multi_loss.2} parent=75 // pred_fallthru
          _
        // Predicated region
        $region81: #{multi_loss.2} parent=75 // pred_check
          %p1156 = pneg %p209
        $region82: #{multi_loss.2} parent=75 // pred_check_branch
          %1158 = sbr.rel (%p1156) target = $region84
        $region83: #{multi_loss.2} parent=75 // pred_region
          %p1159 = scmp.lt.s32.totalorder %s24, 1
          %s1160 = scalar_select %p1159, %s24, 1
          %s1161 = smul.addr %s1160, 6
          %s1162 = smul.addr %s1161, 4
          %s1163 = scalar_lea.vmem %s7, %s1162
        $region84: #{multi_loss.2} parent=75 // pred_fallthru
          _
        // Predicated region
        $region85: #{multi_loss.2} parent=75 // pred_check
          %p1164 = pneg %p235
        $region86: #{multi_loss.2} parent=75 // pred_check_branch
          %1166 = sbr.rel (%p1164) target = $region88
        $region87: #{multi_loss.2} parent=75 // pred_region
          %p1167 = scmp.lt.s32.totalorder %s24, 1
          %s1168 = scalar_select %p1167, %s24, 1
          %s1169 = smul.addr %s1168, 6
          %s1170 = smul.addr %s1169, 8
          %s1171 = scalar_lea.vmem %s8, %s1170
        $region88: #{multi_loss.2} parent=75 // pred_fallthru
          _
        // Predicated region
        $region89: #{multi_loss.2} parent=75 // pred_check
          %p1172 = pneg %p261
        $region90: #{multi_loss.2} parent=75 // pred_check_branch
          %1174 = sbr.rel (%p1172) target = $region92
        $region91: #{multi_loss.2} parent=75 // pred_region
          %p1175 = scmp.lt.s32.totalorder %s24, 1
          %s1176 = scalar_select %p1175, %s24, 1
          %s1177 = smul.addr %s1176, 12
          %s1178 = smul.addr %s1177, 8
          %s1179 = scalar_lea.vmem %s9, %s1178
        $region92: #{multi_loss.2} parent=75 // pred_fallthru
          _
      $region76: #{multi_loss.2} parent=5 // pred_fallthru
        _
    $region6: #{multi_loss.2} parent=1 // loop_footer
      %s22 = sadd.s32 1, %s18
    $region7: #{multi_loss.2} parent=1 // loop_footer_branch
      %17 = sbr.rel target = $region3
    $region8: #{multi_loss.2} parent=1 // loop_exit
      _
    %1180 = vsyncpa [#allocation3], 1
    %s1181 = scalar_lea.sflag [#allocation3], 1
    %1182 = vsyncpa %s1181, 1

// kernel: multi_loss.3
$region0: #{multi_loss.3}
  #allocation0 [shape = 'u32[]', space=smem, size = 0x4, offset = 0x4, fixed_abs, tag = 'smem constant byte address 0x4 - core index']
  #allocation1 [shape = 'u32[144,128]{1,0:T(1,128)}', space=vmem, size = 0x12000, scoped, tag = 'internal scratch']
  %s0 = inlined_call_operand.vmem [shape: f32[2,9,4], index: 0, kind: input, shape index: {}]
  %s1 = inlined_call_operand.vmem [shape: f32[2,9,4], index: 1, kind: input, shape index: {}]
  %s2 = inlined_call_operand.vmem [shape: f32[2,9,16], index: 2, kind: input, shape index: {}]
  %s3 = inlined_call_operand.vmem [shape: f32[2,9,16], index: 3, kind: input, shape index: {}]
  %s4 = inlined_call_operand.vmem [shape: f32[2,9,64], index: 4, kind: input, shape index: {}]
  %s5 = inlined_call_operand.vmem [shape: f32[2,9,64], index: 5, kind: input, shape index: {}]
  %s6 = inlined_call_operand.vmem [shape: f32[2,9,256], index: 6, kind: input, shape index: {}]
  %s7 = inlined_call_operand.vmem [shape: f32[2,9,256], index: 7, kind: input, shape index: {}]
  %s8 = inlined_call_operand.hbm [shape: f32[1,1], index: 8, kind: output, shape index: {}]
  %s9 = sld [smem:[#allocation0]]
  $region42: #{multi_loss.3} parent=0
    _
  %s11 = ssub.s32 1, %s9
  %s12 = scalar_select 0, %s11, %s9
  $region1: #{multi_loss.3} parent=0
    #allocation2 [shape = 'u8[512]{0}', space=vmem, size = 0x400, scoped, tag = 'output window, operand 0, single buffered']
    #allocation3 [shape = 's32[1]{0}', space=sflag, size = 0x4, scoped, tag = 'scoped memory for multi_loss.3']
    %13 = vsyncpa [#allocation3], 0
    // Predicated region
    $region2: #{multi_loss.3} parent=1 // pred_check
      _
    $region3: #{multi_loss.3} parent=1 // pred_check_branch
      %15 = sbr.rel (0) target = $region5
    $region4: #{multi_loss.3} parent=1 // pred_region
      _
    $region5: #{multi_loss.3} parent=1 // pred_fallthru
      _
    // Predicated region
    $region6: #{multi_loss.3} parent=1 // pred_check
      _
    $region7: #{multi_loss.3} parent=1 // pred_check_branch
      %17 = sbr.rel (0) target = $region9
    $region8: #{multi_loss.3} parent=1 // pred_region
      _
    $region9: #{multi_loss.3} parent=1 // pred_fallthru
      _
    // Predicated region
    $region10: #{multi_loss.3} parent=1 // pred_check
      _
    $region11: #{multi_loss.3} parent=1 // pred_check_branch
      %19 = sbr.rel (0) target = $region13
    $region12: #{multi_loss.3} parent=1 // pred_region
      _
    $region13: #{multi_loss.3} parent=1 // pred_fallthru
      _
    // Predicated region
    $region14: #{multi_loss.3} parent=1 // pred_check
      _
    $region15: #{multi_loss.3} parent=1 // pred_check_branch
      %21 = sbr.rel (0) target = $region17
    $region16: #{multi_loss.3} parent=1 // pred_region
      _
    $region17: #{multi_loss.3} parent=1 // pred_fallthru
      _
    // Predicated region
    $region18: #{multi_loss.3} parent=1 // pred_check
      _
    $region19: #{multi_loss.3} parent=1 // pred_check_branch
      %23 = sbr.rel (0) target = $region21
    $region20: #{multi_loss.3} parent=1 // pred_region
      _
    $region21: #{multi_loss.3} parent=1 // pred_fallthru
      _
    // Predicated region
    $region22: #{multi_loss.3} parent=1 // pred_check
      _
    $region23: #{multi_loss.3} parent=1 // pred_check_branch
      %25 = sbr.rel (0) target = $region25
    $region24: #{multi_loss.3} parent=1 // pred_region
      _
    $region25: #{multi_loss.3} parent=1 // pred_fallthru
      _
    // Predicated region
    $region26: #{multi_loss.3} parent=1 // pred_check
      _
    $region27: #{multi_loss.3} parent=1 // pred_check_branch
      %27 = sbr.rel (0) target = $region29
    $region28: #{multi_loss.3} parent=1 // pred_region
      _
    $region29: #{multi_loss.3} parent=1 // pred_fallthru
      _
    // Predicated region
    $region30: #{multi_loss.3} parent=1 // pred_check
      _
    $region31: #{multi_loss.3} parent=1 // pred_check_branch
      %29 = sbr.rel (0) target = $region33
    $region32: #{multi_loss.3} parent=1 // pred_region
      _
    $region33: #{multi_loss.3} parent=1 // pred_fallthru
      _
    %v30 = vld [vmem:[%s0] sm:$0xff]
    %v31 = vld [vmem:[%s0 + $0x8] sm:$0x1]
    %v32 = vld [vmem:[%s0 + $0x10] sm:$0xff]
    %v33 = vld [vmem:[%s0 + $0x18] sm:$0x1]
    %v34 = vld [vmem:[%s1] sm:$0xff]
    %v35 = vld [vmem:[%s1 + $0x8] sm:$0x1]
    %v36 = vld [vmem:[%s1 + $0x10] sm:$0xff]
    %v37 = vld [vmem:[%s1 + $0x18] sm:$0x1]
    %v38 = vsub.f32 %v30, %v34
    %v39 = vsub.f32 %v31, %v35
    %v40 = vsub.f32 %v32, %v36
    %v41 = vsub.f32 %v33, %v37
    %v42 = vand.u32 2147483647, %v38
    %v43 = vand.u32 2147483647, %v39
    %v44 = vand.u32 2147483647, %v40
    %v45 = vand.u32 2147483647, %v41
    %vm46 = vcmask 26624
    %v47 = vsel %vm46, %v42, 0.0
    %v48 = vsel %vm46, %v44, 0.0
    %v49 = vadd.f32 %v47, %v48
    %50 = vadd.xlane.f32.xlu0 %v49
    %v51 = vpop.xlane.xlu0 %50
    %v52 = vrot.slane %v51, 4
    %v53 = vadd.f32 %v51, %v52
    %v54 = vrot.slane %v53, 2
    %v55 = vadd.f32 %v53, %v54
    %v56 = vrot.slane %v55, 1
    %v57 = vadd.f32 %v55, %v56
    %s58 = vtos %v57
    %s59 = smul.f32 %s58, 0.0016666667
    %s60 = sadd.f32 %s59, 0.0
    %v63 = vrot.slane %v42, 3
    %v64 = vrot.slane %v44, 3
    %v67 = vsel %vm46, %v63, 0.0
    %v68 = vsel %vm46, %v64, 0.0
    %v69 = vadd.f32 %v67, %v68
    %70 = vadd.xlane.f32.xlu0 %v69
    %v71 = vpop.xlane.xlu0 %70
    %v72 = vrot.slane %v71, 4
    %v73 = vadd.f32 %v71, %v72
    %v74 = vrot.slane %v73, 2
    %v75 = vadd.f32 %v73, %v74
    %v76 = vrot.slane %v75, 1
    %v77 = vadd.f32 %v75, %v76
    %s78 = vtos %v77
    %s79 = smul.f32 %s78, 0.0016666667
    %s80 = sadd.f32 %s60, %s79
    %vm83 = vcmask 1041408
    %v84 = vrot.slane %v42, 6
    %v85 = vrot.slane %v43, 6
    %v86 = vsel %vm83, %v84, %v85
    %v87 = vrot.slane %v44, 6
    %v88 = vrot.slane %v45, 6
    %v89 = vsel %vm83, %v87, %v88
    %v92 = vsel %vm46, %v86, 0.0
    %v93 = vsel %vm46, %v89, 0.0
    %v94 = vadd.f32 %v92, %v93
    %95 = vadd.xlane.f32.xlu0 %v94
    %v96 = vpop.xlane.xlu0 %95
    %v97 = vrot.slane %v96, 4
    %v98 = vadd.f32 %v96, %v97
    %v99 = vrot.slane %v98, 2
    %v100 = vadd.f32 %v98, %v99
    %v101 = vrot.slane %v100, 1
    %v102 = vadd.f32 %v100, %v101
    %s103 = vtos %v102
    %s104 = smul.f32 %s103, 0.0033333334
    %s105 = sadd.f32 %s80, %s104
    %v106 = vld [vmem:[%s2] sm:$0xff]
    %v107 = vld [vmem:[%s2 + $0x8] sm:$0x1]
    %v108 = vld [vmem:[%s2 + $0x10] sm:$0xff]
    %v109 = vld [vmem:[%s2 + $0x18] sm:$0x1]
    %v110 = vld [vmem:[%s3] sm:$0xff]
    %v111 = vld [vmem:[%s3 + $0x8] sm:$0x1]
    %v112 = vld [vmem:[%s3 + $0x10] sm:$0xff]
    %v113 = vld [vmem:[%s3 + $0x18] sm:$0x1]
    %v114 = vsub.f32 %v106, %v110
    %v115 = vsub.f32 %v107, %v111
    %v116 = vsub.f32 %v108, %v112
    %v117 = vsub.f32 %v109, %v113
    %v118 = vand.u32 2147483647, %v114
    %v119 = vand.u32 2147483647, %v115
    %v120 = vand.u32 2147483647, %v116
    %v121 = vand.u32 2147483647, %v117
    %vm122 = vcmask 124928
    %v123 = vsel %vm122, %v118, 0.0
    %v124 = vsel %vm122, %v120, 0.0
    %v125 = vadd.f32 %v123, %v124
    %126 = vadd.xlane.f32.xlu0 %v125
    %v127 = vpop.xlane.xlu0 %126
    %v128 = vrot.slane %v127, 4
    %v129 = vadd.f32 %v127, %v128
    %v130 = vrot.slane %v129, 2
    %v131 = vadd.f32 %v129, %v130
    %v132 = vrot.slane %v131, 1
    %v133 = vadd.f32 %v131, %v132
    %s134 = vtos %v133
    %s135 = smul.f32 %s134, 0.00083333335
    %s136 = sadd.f32 %s105, %s135
    %v139 = vrot.slane %v118, 3
    %v140 = vrot.slane %v120, 3
    %v143 = vsel %vm122, %v139, 0.0
    %v144 = vsel %vm122, %v140, 0.0
    %v145 = vadd.f32 %v143, %v144
    %146 = vadd.xlane.f32.xlu0 %v145
    %v147 = vpop.xlane.xlu0 %146
    %v148 = vrot.slane %v147, 4
    %v149 = vadd.f32 %v147, %v148
    %v150 = vrot.slane %v149, 2
    %v151 = vadd.f32 %v149, %v150
    %v152 = vrot.slane %v151, 1
    %v153 = vadd.f32 %v151, %v152
    %s154 = vtos %v153
    %s155 = smul.f32 %s154, 0.00083333335
    %s156 = sadd.f32 %s136, %s155
    %v159 = vrot.slane %v118, 6
    %v160 = vrot.slane %v119, 6
    %v161 = vsel %vm83, %v159, %v160
    %v162 = vrot.slane %v120, 6
    %v163 = vrot.slane %v121, 6
    %v164 = vsel %vm83, %v162, %v163
    %v167 = vsel %vm122, %v161, 0.0
    %v168 = vsel %vm122, %v164, 0.0
    %v169 = vadd.f32 %v167, %v168
    %170 = vadd.xlane.f32.xlu0 %v169
    %v171 = vpop.xlane.xlu0 %170
    %v172 = vrot.slane %v171, 4
    %v173 = vadd.f32 %v171, %v172
    %v174 = vrot.slane %v173, 2
    %v175 = vadd.f32 %v173, %v174
    %v176 = vrot.slane %v175, 1
    %v177 = vadd.f32 %v175, %v176
    %s178 = vtos %v177
    %s179 = smul.f32 %s178, 0.0016666667
    %s180 = sadd.f32 %s156, %s179
    %v181 = vld [vmem:[%s4] sm:$0xff]
    %v182 = vld [vmem:[%s4 + $0x8] sm:$0x1]
    %v183 = vld [vmem:[%s4 + $0x10] sm:$0xff]
    %v184 = vld [vmem:[%s4 + $0x18] sm:$0x1]
    %v185 = vld [vmem:[%s5] sm:$0xff]
    %v186 = vld [vmem:[%s5 + $0x8] sm:$0x1]
    %v187 = vld [vmem:[%s5 + $0x10] sm:$0xff]
    %v188 = vld [vmem:[%s5 + $0x18] sm:$0x1]
    %v189 = vsub.f32 %v181, %v185
    %v190 = vsub.f32 %v182, %v186
    %v191 = vsub.f32 %v183, %v187
    %v192 = vsub.f32 %v184, %v188
    %v193 = vand.u32 2147483647, %v189
    %v194 = vand.u32 2147483647, %v190
    %v195 = vand.u32 2147483647, %v191
    %v196 = vand.u32 2147483647, %v192
    %vm197 = vcmask 518144
    %v198 = vsel %vm197, %v193, 0.0
    %v199 = vsel %vm197, %v195, 0.0
    %v200 = vadd.f32 %v198, %v199
    %201 = vadd.xlane.f32.xlu0 %v200
    %v202 = vpop.xlane.xlu0 %201
    %v203 = vrot.slane %v202, 4
    %v204 = vadd.f32 %v202, %v203
    %v205 = vrot.slane %v204, 2
    %v206 = vadd.f32 %v204, %v205
    %v207 = vrot.slane %v206, 1
    %v208 = vadd.f32 %v206, %v207
    %s209 = vtos %v208
    %s210 = smul.f32 %s209, 0.00041666668
    %s211 = sadd.f32 %s180, %s210
    %v214 = vrot.slane %v193, 3
    %v215 = vrot.slane %v195, 3
    %v218 = vsel %vm197, %v214, 0.0
    %v219 = vsel %vm197, %v215, 0.0
    %v220 = vadd.f32 %v218, %v219
    %221 = vadd.xlane.f32.xlu0 %v220
    %v222 = vpop.xlane.xlu0 %221
    %v223 = vrot.slane %v222, 4
    %v224 = vadd.f32 %v222, %v223
    %v225 = vrot.slane %v224, 2
    %v226 = vadd.f32 %v224, %v225
    %v227 = vrot.slane %v226, 1
    %v228 = vadd.f32 %v226, %v227
    %s229 = vtos %v228
    %s230 = smul.f32 %s229, 0.00041666668
    %s231 = sadd.f32 %s211, %s230
    %v234 = vrot.slane %v193, 6
    %v235 = vrot.slane %v194, 6
    %v236 = vsel %vm83, %v234, %v235
    %v237 = vrot.slane %v195, 6
    %v238 = vrot.slane %v196, 6
    %v239 = vsel %vm83, %v237, %v238
    %v242 = vsel %vm197, %v236, 0.0
    %v243 = vsel %vm197, %v239, 0.0
    %v244 = vadd.f32 %v242, %v243
    %245 = vadd.xlane.f32.xlu0 %v244
    %v246 = vpop.xlane.xlu0 %245
    %v247 = vrot.slane %v246, 4
    %v248 = vadd.f32 %v246, %v247
    %v249 = vrot.slane %v248, 2
    %v250 = vadd.f32 %v248, %v249
    %v251 = vrot.slane %v250, 1
    %v252 = vadd.f32 %v250, %v251
    %s253 = vtos %v252
    %s254 = smul.f32 %s253, 0.00083333335
    %s255 = sadd.f32 %s231, %s254
    %v256 = vld [vmem:[%s6] sm:$0xff]
    %v257 = vld [vmem:[%s6 + $0x8] sm:$0xff]
    %v258 = vld [vmem:[%s6 + $0x10] sm:$0x1]
    %v259 = vld [vmem:[%s6 + $0x18] sm:$0x1]
    %v260 = vld [vmem:[%s6 + $0x20] sm:$0xff]
    %v261 = vld [vmem:[%s6 + $0x28] sm:$0xff]
    %v262 = vld [vmem:[%s6 + $0x30] sm:$0x1]
    %v263 = vld [vmem:[%s6 + $0x38] sm:$0x1]
    %v264 = vld [vmem:[%s7] sm:$0xff]
    %v265 = vld [vmem:[%s7 + $0x8] sm:$0xff]
    %v266 = vld [vmem:[%s7 + $0x10] sm:$0x1]
    %v267 = vld [vmem:[%s7 + $0x18] sm:$0x1]
    %v268 = vld [vmem:[%s7 + $0x20] sm:$0xff]
    %v269 = vld [vmem:[%s7 + $0x28] sm:$0xff]
    %v270 = vld [vmem:[%s7 + $0x30] sm:$0x1]
    %v271 = vld [vmem:[%s7 + $0x38] sm:$0x1]
    %v272 = vsub.f32 %v256, %v264
    %v273 = vsub.f32 %v257, %v265
    %v274 = vsub.f32 %v258, %v266
    %v275 = vsub.f32 %v259, %v267
    %v276 = vsub.f32 %v260, %v268
    %v277 = vsub.f32 %v261, %v269
    %v278 = vsub.f32 %v262, %v270
    %v279 = vsub.f32 %v263, %v271
    %v280 = vand.u32 2147483647, %v272
    %v281 = vand.u32 2147483647, %v273
    %v282 = vand.u32 2147483647, %v274
    %v283 = vand.u32 2147483647, %v275
    %v284 = vand.u32 2147483647, %v276
    %v285 = vand.u32 2147483647, %v277
    %v286 = vand.u32 2147483647, %v278
    %v287 = vand.u32 2147483647, %v279
    %vm288 = vcmask 1042432
    %v289 = vsel %vm288, %v280, 0.0
    %v290 = vsel %vm288, %v281, 0.0
    %v291 = vadd.f32 %v289, %v290
    %v292 = vsel %vm288, %v284, 0.0
    %v293 = vadd.f32 %v291, %v292
    %v294 = vsel %vm288, %v285, 0.0
    %v295 = vadd.f32 %v293, %v294
    %296 = vadd.xlane.f32.xlu0 %v295
    %v297 = vpop.xlane.xlu0 %296
    %v298 = vrot.slane %v297, 4
    %v299 = vadd.f32 %v297, %v298
    %v300 = vrot.slane %v299, 2
    %v301 = vadd.f32 %v299, %v300
    %v302 = vrot.slane %v301, 1
    %v303 = vadd.f32 %v301, %v302
    %s304 = vtos %v303
    %s305 = smul.f32 %s304, 0.00020833334
    %s306 = sadd.f32 %s255, %s305
    %v311 = vrot.slane %v280, 3
    %v312 = vrot.slane %v281, 3
    %v313 = vrot.slane %v284, 3
    %v314 = vrot.slane %v285, 3
    %v319 = vsel %vm288, %v311, 0.0
    %v320 = vsel %vm288, %v312, 0.0
    %v321 = vadd.f32 %v319, %v320
    %v322 = vsel %vm288, %v313, 0.0
    %v323 = vadd.f32 %v321, %v322
    %v324 = vsel %vm288, %v314, 0.0
    %v325 = vadd.f32 %v323, %v324
    %326 = vadd.xlane.f32.xlu0 %v325
    %v327 = vpop.xlane.xlu0 %326
    %v328 = vrot.slane %v327, 4
    %v329 = vadd.f32 %v327, %v328
    %v330 = vrot.slane %v329, 2
    %v331 = vadd.f32 %v329, %v330
    %v332 = vrot.slane %v331, 1
    %v333 = vadd.f32 %v331, %v332
    %s334 = vtos %v333
    %s335 = smul.f32 %s334, 0.00020833334
    %s336 = sadd.f32 %s306, %s335
    %v341 = vrot.slane %v280, 6
    %v342 = vrot.slane %v282, 6
    %v343 = vsel %vm83, %v341, %v342
    %v344 = vrot.slane %v281, 6
    %v345 = vrot.slane %v283, 6
    %v346 = vsel %vm83, %v344, %v345
    %v347 = vrot.slane %v284, 6
    %v348 = vrot.slane %v286, 6
    %v349 = vsel %vm83, %v347, %v348
    %v350 = vrot.slane %v285, 6
    %v351 = vrot.slane %v287, 6
    %v352 = vsel %vm83, %v350, %v351
    %v357 = vsel %vm288, %v343, 0.0
    %v358 = vsel %vm288, %v346, 0.0
    %v359 = vadd.f32 %v357, %v358
    %v360 = vsel %vm288, %v349, 0.0
    %v361 = vadd.f32 %v359, %v360
    %v362 = vsel %vm288, %v352, 0.0
    %v363 = vadd.f32 %v361, %v362
    %364 = vadd.xlane.f32.xlu0 %v363
    %v365 = vpop.xlane.xlu0 %364
    %v366 = vrot.slane %v365, 4
    %v367 = vadd.f32 %v365, %v366
    %v368 = vrot.slane %v367, 2
    %v369 = vadd.f32 %v367, %v368
    %v370 = vrot.slane %v369, 1
    %v371 = vadd.f32 %v369, %v370
    %s372 = vtos %v371
    %s373 = smul.f32 %s372, 0.00041666668
    %s374 = sadd.f32 %s336, %s373
    %v375 = vstv %s374
    %vm376 = vcmask 0
    %377 = vst.msk [vmem:[#allocation2] sm:$0x1] %vm376, %v375
    // Predicated region
    $region34: #{multi_loss.3} parent=1 // pred_check
      _
    $region35: #{multi_loss.3} parent=1 // pred_check_branch
      %379 = sbr.rel (0) target = $region37
    $region36: #{multi_loss.3} parent=1 // pred_region
      %s381 = ssub.s32 16, 16
      %382 = vsyncadd [#allocation3], %s381
      %s384 = sshll.u32 [#allocation2], 4
      %s385 = int_to_ptr.vmem [resolvable:$true] %s384
      %387 = dma.vmem_to_hbm [thread:$0]  %s385, 16, %s8, [#allocation3]
    $region37: #{multi_loss.3} parent=1 // pred_fallthru
      _
    // Predicated region
    $region38: #{multi_loss.3} parent=1 // pred_check
      _
    $region39: #{multi_loss.3} parent=1 // pred_check_branch
      %389 = sbr.rel (0) target = $region41
    $region40: #{multi_loss.3} parent=1 // pred_region
      %390 = dma.done [#allocation3], 16
    $region41: #{multi_loss.3} parent=1 // pred_fallthru
      _
    %391 = vsyncpa [#allocation3], 1

</llo_original>
